<compile_context>
chip_gen: v7x
topology: tpu7x:2x2x1
jax: 0.10.0
libtpu: 0.0.40
codegen_flags: <defaults>
</compile_context>

<pallas_src>
import numpy as np

import jax
import jax.numpy as jnp
from jax.experimental import pallas as pl
from jax.experimental.pallas import tpu as pltpu


# ----------------------------------------------------------------------------------
# Kernel
# ----------------------------------------------------------------------------------
def rcab_kernel(x_ref, m1_ref, m2_ref, bias_ref, wd_ref, wu_ref, o_ref):
    # x_ref block: (Bt, H, W*C), lane-dense.
    bt, h, wc = x_ref.shape
    n = bt * h
    cr = wd_ref.shape[1]

    # MXU operand straight from the input block — no long-lived f32 copy of x.
    x_bf = x_ref[...].reshape(n, wc).astype(jnp.bfloat16)     # free reshape (H % 8 == 0)

    # Row index within each image (masks the y-halo across images packed in one block).
    row = jax.lax.broadcasted_iota(jnp.int32, (n, 1), 0) % h

    biases = bias_ref[...]                                    # (4, WC) f32, packed rows
    b1 = biases[0:1, :]
    b2 = biases[1:2, :]
    bu = biases[2:3, :]
    bd = biases[3:4, 0:cr]

    def conv3x3(inp_bf16, m_ref, bias):
        # One fused banded matmul: columns [dy*wc:(dy+1)*wc] hold the dy-th tap result.
        a = jnp.dot(inp_bf16, m_ref[...], preferred_element_type=jnp.float32)  # (n, 3*wc)
        a0 = a[:, 0:wc]
        a1 = a[:, wc:2 * wc]
        a2 = a[:, 2 * wc:3 * wc]
        # dy=0 tap: out[y] += a0[y-1]   (XLU roll; zero at first row of each image)
        down = jnp.where(row == 0, 0.0, pltpu.roll(a0, shift=1, axis=0))
        # dy=2 tap: out[y] += a2[y+1]   (zero at last row of each image)
        up = jnp.where(row == h - 1, 0.0, pltpu.roll(a2, shift=n - 1, axis=0))
        return a1 + down + up + bias

    # body: conv -> ReLU -> conv
    h1 = jnp.maximum(conv3x3(x_bf, m1_ref, b1), 0.0)
    res = conv3x3(h1.astype(jnp.bfloat16), m2_ref, b2)        # (n, wc) f32

    # CALayer: global average pool + 1x1 reduce + ReLU + 1x1 expand + sigmoid.
    res3 = res.reshape(bt, h, wc)
    pooled = jnp.sum(res3, axis=1)                            # (bt, wc); 1/(H*W) folded in wd
    z = jnp.maximum(
        jnp.dot(pooled, wd_ref[...], preferred_element_type=jnp.float32) + bd, 0.0)
    att = jax.nn.sigmoid(
        jnp.dot(z, wu_ref[...], preferred_element_type=jnp.float32) + bu)      # (bt, wc)

    # scale + residual add; full-block lane-dense store.  Re-read x from the resident
    # VMEM block instead of keeping an f32 copy alive across the whole kernel.
    out = res3 * att[:, None, :] + x_ref[...].astype(jnp.float32)
    o_ref[...] = out.astype(o_ref.dtype)


# ----------------------------------------------------------------------------------
# Wrapper-side weight lowering
# ----------------------------------------------------------------------------------
def _band_matrices_fused(w_hwio, w_spatial):
    """Lower a (K,K,Cin,Cout) HWIO conv weight into ONE fused banded matrix.

    For each y-tap dy, M_dy[xi*Cin+ci, xo*Cout+co] = w[dy, xi-xo+pad, ci, co] (0 outside
    the kernel support — the x-direction 'SAME' padding is baked in).  The K taps are
    concatenated along the output-column axis -> (W*Cin, K*W*Cout), so one matmul
    produces all three tap results in lane-aligned column blocks.
    """
    k, _, cin, cout = w_hwio.shape
    pad = k // 2
    xi = np.arange(w_spatial)[:, None]
    xo = np.arange(w_spatial)[None, :]
    dx = xi - xo + pad                                        # (W, W) kernel-tap index
    valid = (dx >= 0) & (dx < k)
    dxc = np.clip(dx, 0, k - 1)
    m = jnp.asarray(w_hwio)[:, dxc]                           # (K, W, W, Cin, Cout)
    m = m * jnp.asarray(valid)[None, :, :, None, None]
    m = jnp.transpose(m, (0, 1, 3, 2, 4))                     # (K, Xi, Cin, Xo, Cout)
    m = m.reshape(k, w_spatial * cin, w_spatial * cout)       # (K, W*Cin, W*Cout)
    return jnp.transpose(m, (1, 0, 2)).reshape(w_spatial * cin, k * w_spatial * cout)


# ----------------------------------------------------------------------------------
# Forward
# ----------------------------------------------------------------------------------
def rcab_forward(x, w1, b1, w2, b2, wd, bd, wu, bu, *, block_b=None):
    """x: (B,H,W,C) NHWC; w1,w2: (K,K,C,C) HWIO; wd:(C,Cr) bd:(Cr,) wu:(Cr,C) bu:(C,)."""
    B, H, W, C = x.shape
    K = w1.shape[0]
    Cr = wd.shape[1]
    WC = W * C

    if block_b is None:
        # Target an MXU-friendly matmul M (~256 rows per step), but keep the grid
        # length >= 2: v7x has 2 TensorCores and a grid of 1 also gives the BlockSpec
        # pipeline nothing to overlap.
        target = max(1, 256 // H)
        cap = max(1, min(target, B // 2)) if B >= 2 else 1
        block_b = 1
        for cand in range(cap, 0, -1):
            if B % cand == 0:
                block_b = cand
                break
    assert B % block_b == 0

    # Lane-dense activation view.
    x2 = x.reshape(B, H, WC)

    # Conv weights lowered to fused banded lane-axis matrices (bf16 MXU operands).
    m1f = _band_matrices_fused(w1, W).astype(jnp.bfloat16)    # (WC, K*WC)
    m2f = _band_matrices_fused(w2, W).astype(jnp.bfloat16)

    # Pack the four small bias rows into ONE lane-dense operand (one spec / one DMA).
    biases = jnp.zeros((4, WC), jnp.float32)
    biases = biases.at[0].set(jnp.tile(b1.astype(jnp.float32), W))    # conv1 bias
    biases = biases.at[1].set(jnp.tile(b2.astype(jnp.float32), W))    # conv2 bias
    biases = biases.at[2].set(jnp.tile(bu.astype(jnp.float32), W))    # CA expand bias
    biases = biases.at[3, :Cr].set(bd.astype(jnp.float32))            # CA reduce bias

    # CA weights pre-tiled into the lane-dense layout; 1/(H*W) mean folded into wd_big.
    wd_big = jnp.tile(wd.astype(jnp.float32), (W, 1)) / float(H * W)  # (WC, Cr)
    wu_big = jnp.tile(wu.astype(jnp.float32), (1, W))                 # (Cr, WC)

    grid = (B // block_b,)

    # VMEM budget: activation blocks double-buffered, constants single-buffered,
    # headroom for in-kernel f32 temporaries (the (N, 3*WC) tap results etc).
    act_bytes = block_b * H * WC * x.dtype.itemsize
    const_bytes = (m1f.size + m2f.size) * 2 + (biases.size + wd_big.size + wu_big.size) * 4
    temp_bytes = 10 * block_b * H * WC * 4
    vmem_limit = int(min(max(4 * act_bytes + const_bytes + temp_bytes + (4 << 20),
                             32 << 20),
                         60 << 20))

    flops = int(12 * B * H * WC * WC + 4 * B * WC * Cr)
    bytes_accessed = int(2 * x.size * x.dtype.itemsize + const_bytes)
    cost = pl.CostEstimate(flops=flops, transcendentals=int(B * WC),
                           bytes_accessed=bytes_accessed)

    # Grid-invariant operands: single buffer (default double-buffer is wasted VMEM).
    single = pl.Buffered(buffer_count=1)

    out2 = pl.pallas_call(
        rcab_kernel,
        out_shape=jax.ShapeDtypeStruct((B, H, WC), x.dtype),
        grid_spec=pltpu.PrefetchScalarGridSpec(
            num_scalar_prefetch=0,
            grid=grid,
            in_specs=[
                pl.BlockSpec((block_b, H, WC), lambda b: (b, 0, 0)),          # x (lane-dense)
                pl.BlockSpec((WC, K * WC), lambda b: (0, 0),
                             pipeline_mode=single),                           # conv1 banded W
                pl.BlockSpec((WC, K * WC), lambda b: (0, 0),
                             pipeline_mode=single),                           # conv2 banded W
                pl.BlockSpec((4, WC), lambda b: (0, 0),
                             pipeline_mode=single),                           # packed biases
                pl.BlockSpec((WC, Cr), lambda b: (0, 0),
                             pipeline_mode=single),                           # CA reduce W
                pl.BlockSpec((Cr, WC), lambda b: (0, 0),
                             pipeline_mode=single),                           # CA expand W
            ],
            out_specs=pl.BlockSpec((block_b, H, WC), lambda b: (b, 0, 0)),
        ),
        compiler_params=pltpu.CompilerParams(
            dimension_semantics=("parallel",),
            vmem_limit_bytes=vmem_limit),
        cost_estimate=cost,
    )(x2, m1f, m2f, biases, wd_big, wu_big)

    return out2.reshape(B, H, W, C)


# ----------------------------------------------------------------------------------
# Pure-JAX reference (matches the PyTorch module) and test
# ----------------------------------------------------------------------------------
def rcab_reference(x, w1, b1, w2, b2, wd, bd, wu, bu):
    def conv(a, w, b):
        return jax.lax.conv_general_dilated(
            a, w, window_strides=(1, 1), padding="SAME",
            dimension_numbers=("NHWC", "HWIO", "NHWC")) + b
    h = jax.nn.relu(conv(x, w1, b1))
    res = conv(h, w2, b2)
    pooled = jnp.mean(res, axis=(1, 2), keepdims=True)
    z = jax.nn.relu(jnp.einsum("bijc,cr->bijr", pooled, wd) + bd)
    y = jax.nn.sigmoid(jnp.einsum("bijr,rc->bijc", z, wu) + bu)
    return res * y + x


if __name__ == "__main__":
    # RCAB(conv, n_feat=16, kernel_size=3, reduction=4) on a small NHWC batch.
    B, H, W, C = 2, 16, 16, 16
    R = 4
    Cr = C // R
    K = 3

    key = jax.random.PRNGKey(0)
    ks = jax.random.split(key, 9)
    x = jax.random.normal(ks[0], (B, H, W, C), jnp.float32)

    w1 = jax.random.normal(ks[1], (K, K, C, C), jnp.float32) * 0.05
    b1 = jax.random.normal(ks[2], (C,), jnp.float32) * 0.05
    w2 = jax.random.normal(ks[3], (K, K, C, C), jnp.float32) * 0.05
    b2 = jax.random.normal(ks[4], (C,), jnp.float32) * 0.05
    wd = jax.random.normal(ks[5], (C, Cr), jnp.float32) * 0.1
    bd = jax.random.normal(ks[6], (Cr,), jnp.float32) * 0.1
    wu = jax.random.normal(ks[7], (Cr, C), jnp.float32) * 0.1
    bu = jax.random.normal(ks[8], (C,), jnp.float32) * 0.1

    out = rcab_forward(x, w1, b1, w2, b2, wd, bd, wu, bu)
    out = jax.block_until_ready(out)

    ref = rcab_reference(x, w1, b1, w2, b2, wd, bd, wu, bu)
    ref = jax.block_until_ready(ref)

    assert out.shape == (B, H, W, C)
    # bf16 MXU operands (f32 accumulation) need a looser tolerance than pure f32.
    max_err = jnp.max(jnp.abs(out - ref))
    assert jnp.allclose(out, ref, atol=2e-2, rtol=2e-2), f"max abs err {max_err}"

    print("KERNEL_OK")
</pallas_src>

<mosaic_0001>
module attributes {stable_mosaic.version = 11 : i64} {
  func.func @rcab_kernel(%arg0: i32, %arg1: memref<1x16x256xf32, #tpu.memory_space<vmem>>, %arg2: memref<256x768xbf16, #tpu.memory_space<vmem>>, %arg3: memref<256x768xbf16, #tpu.memory_space<vmem>>, %arg4: memref<4x256xf32, #tpu.memory_space<vmem>>, %arg5: memref<256x4xf32, #tpu.memory_space<vmem>>, %arg6: memref<4x256xf32, #tpu.memory_space<vmem>>, %arg7: memref<1x16x256xf32, #tpu.memory_space<vmem>>) attributes {dimension_semantics = [#tpu.dimension_semantics<parallel>], iteration_bounds = array<i64: 2>, scalar_prefetch = 0 : i64, scratch_operands = 0 : i64, tpu.core_type = #tpu.core_type<tc>, window_params = [{transform_indices = @transform_0, window_bounds = array<i64: 1, 16, 256>}, {pipeline_mode = #tpu.pipeline_mode<synchronous>, transform_indices = @transform_1, window_bounds = array<i64: 256, 768>}, {pipeline_mode = #tpu.pipeline_mode<synchronous>, transform_indices = @transform_2, window_bounds = array<i64: 256, 768>}, {pipeline_mode = #tpu.pipeline_mode<synchronous>, transform_indices = @transform_3, window_bounds = array<i64: 4, 256>}, {pipeline_mode = #tpu.pipeline_mode<synchronous>, transform_indices = @transform_4, window_bounds = array<i64: 256, 4>}, {pipeline_mode = #tpu.pipeline_mode<synchronous>, transform_indices = @transform_5, window_bounds = array<i64: 4, 256>}, {transform_indices = @transform_6, window_bounds = array<i64: 1, 16, 256>}]} {
    %c0 = arith.constant 0 : index
    %c0_0 = arith.constant 0 : index
    %c0_1 = arith.constant 0 : index
    %0 = vector.load %arg1[%c0, %c0_0, %c0_1] : memref<1x16x256xf32, #tpu.memory_space<vmem>>, vector<1x16x256xf32>
    %1 = vector.shape_cast %0 : vector<1x16x256xf32> to vector<16x256xf32>
    %2 = arith.truncf %1 : vector<16x256xf32> to vector<16x256xbf16>
    %3 = tpu.iota {dimensions = array<i32: 0>} : vector<16x1xi32>
    %c16_i32 = arith.constant 16 : i32
    %c0_i32 = arith.constant 0 : i32
    %4 = arith.cmpi eq, %c16_i32, %c0_i32 : i32
    %c1_i32 = arith.constant 1 : i32
    %5 = arith.select %4, %c1_i32, %c16_i32 : i32
    %6 = vector.broadcast %5 : i32 to vector<16x1xi32>
    %7 = arith.remsi %3, %6 : vector<16x1xi32>
    %c0_i32_2 = arith.constant 0 : i32
    %8 = vector.broadcast %c0_i32_2 : i32 to vector<16x1xi32>
    %9 = arith.cmpi ne, %7, %8 : vector<16x1xi32>
    %c0_i32_3 = arith.constant 0 : i32
    %10 = vector.broadcast %c0_i32_3 : i32 to vector<16x1xi32>
    %11 = arith.cmpi slt, %7, %10 : vector<16x1xi32>
    %c0_i32_4 = arith.constant 0 : i32
    %12 = arith.cmpi slt, %5, %c0_i32_4 : i32
    %13 = vector.broadcast %12 : i1 to vector<16x1xi1>
    %14 = vector.broadcast %13 : vector<16x1xi1> to vector<16x1xi1>
    %15 = arith.xori %11, %14 : vector<16x1xi1>
    %16 = arith.andi %15, %9 : vector<16x1xi1>
    %17 = vector.broadcast %5 : i32 to vector<16x1xi32>
    %18 = arith.addi %7, %17 : vector<16x1xi32>
    %19 = arith.select %16, %18, %7 : vector<16x1xi1>, vector<16x1xi32>
    %c0_5 = arith.constant 0 : index
    %c0_6 = arith.constant 0 : index
    %20 = vector.load %arg4[%c0_5, %c0_6] : memref<4x256xf32, #tpu.memory_space<vmem>>, vector<4x256xf32>
    %21 = vector.extract_strided_slice %20 {offsets = [0, 0], sizes = [1, 256], strides = [1, 1]} : vector<4x256xf32> to vector<1x256xf32>
    %22 = vector.extract_strided_slice %20 {offsets = [1, 0], sizes = [1, 256], strides = [1, 1]} : vector<4x256xf32> to vector<1x256xf32>
    %23 = vector.extract_strided_slice %20 {offsets = [2, 0], sizes = [1, 256], strides = [1, 1]} : vector<4x256xf32> to vector<1x256xf32>
    %24 = vector.extract_strided_slice %20 {offsets = [3, 0], sizes = [1, 4], strides = [1, 1]} : vector<4x256xf32> to vector<1x4xf32>
    %c0_7 = arith.constant 0 : index
    %c0_8 = arith.constant 0 : index
    %25 = vector.load %arg2[%c0_7, %c0_8] : memref<256x768xbf16, #tpu.memory_space<vmem>>, vector<256x768xbf16>
    %cst = arith.constant dense<0.000000e+00> : vector<16x768xf32>
    %26 = tpu.matmul %2, %25, %cst {dimension_numbers = #tpu.dot_dimension_numbers<[1], [0], [0], [1], [0, 0, 1, 1], [], []>} : vector<16x256xbf16>, vector<256x768xbf16>, vector<16x768xf32> -> vector<16x768xf32>
    %27 = vector.extract_strided_slice %26 {offsets = [0, 0], sizes = [16, 256], strides = [1, 1]} : vector<16x768xf32> to vector<16x256xf32>
    %28 = vector.extract_strided_slice %26 {offsets = [0, 256], sizes = [16, 256], strides = [1, 1]} : vector<16x768xf32> to vector<16x256xf32>
    %29 = vector.extract_strided_slice %26 {offsets = [0, 512], sizes = [16, 256], strides = [1, 1]} : vector<16x768xf32> to vector<16x256xf32>
    %c0_i32_9 = arith.constant 0 : i32
    %30 = vector.broadcast %c0_i32_9 : i32 to vector<16x1xi32>
    %31 = arith.cmpi eq, %19, %30 : vector<16x1xi32>
    %c1_i32_10 = arith.constant 1 : i32
    %32 = tpu.dynamic_rotate %27 by %c1_i32_10 dim 0 : vector<16x256xf32>, i32 -> vector<16x256xf32>
    %cst_11 = arith.constant 0.000000e+00 : f32
    %33 = vector.shape_cast %31 : vector<16x1xi1> to vector<16x1xi1>
    %34 = vector.broadcast %33 : vector<16x1xi1> to vector<16x256xi1>
    %35 = vector.broadcast %cst_11 : f32 to vector<16x256xf32>
    %36 = arith.select %34, %35, %32 : vector<16x256xi1>, vector<16x256xf32>
    %c15_i32 = arith.constant 15 : i32
    %37 = vector.broadcast %c15_i32 : i32 to vector<16x1xi32>
    %38 = arith.cmpi eq, %19, %37 : vector<16x1xi32>
    %c15_i32_12 = arith.constant 15 : i32
    %39 = tpu.dynamic_rotate %29 by %c15_i32_12 dim 0 : vector<16x256xf32>, i32 -> vector<16x256xf32>
    %cst_13 = arith.constant 0.000000e+00 : f32
    %40 = vector.shape_cast %38 : vector<16x1xi1> to vector<16x1xi1>
    %41 = vector.broadcast %40 : vector<16x1xi1> to vector<16x256xi1>
    %42 = vector.broadcast %cst_13 : f32 to vector<16x256xf32>
    %43 = arith.select %41, %42, %39 : vector<16x256xi1>, vector<16x256xf32>
    %44 = arith.addf %28, %36 : vector<16x256xf32>
    %45 = arith.addf %44, %43 : vector<16x256xf32>
    %46 = vector.broadcast %21 : vector<1x256xf32> to vector<16x256xf32>
    %47 = arith.addf %45, %46 : vector<16x256xf32>
    %cst_14 = arith.constant 0.000000e+00 : f32
    %48 = vector.broadcast %cst_14 : f32 to vector<16x256xf32>
    %49 = arith.maximumf %47, %48 : vector<16x256xf32>
    %50 = arith.truncf %49 : vector<16x256xf32> to vector<16x256xbf16>
    %c0_15 = arith.constant 0 : index
    %c0_16 = arith.constant 0 : index
    %51 = vector.load %arg3[%c0_15, %c0_16] : memref<256x768xbf16, #tpu.memory_space<vmem>>, vector<256x768xbf16>
    %cst_17 = arith.constant dense<0.000000e+00> : vector<16x768xf32>
    %52 = tpu.matmul %50, %51, %cst_17 {dimension_numbers = #tpu.dot_dimension_numbers<[1], [0], [0], [1], [0, 0, 1, 1], [], []>} : vector<16x256xbf16>, vector<256x768xbf16>, vector<16x768xf32> -> vector<16x768xf32>
    %53 = vector.extract_strided_slice %52 {offsets = [0, 0], sizes = [16, 256], strides = [1, 1]} : vector<16x768xf32> to vector<16x256xf32>
    %54 = vector.extract_strided_slice %52 {offsets = [0, 256], sizes = [16, 256], strides = [1, 1]} : vector<16x768xf32> to vector<16x256xf32>
    %55 = vector.extract_strided_slice %52 {offsets = [0, 512], sizes = [16, 256], strides = [1, 1]} : vector<16x768xf32> to vector<16x256xf32>
    %c0_i32_18 = arith.constant 0 : i32
    %56 = vector.broadcast %c0_i32_18 : i32 to vector<16x1xi32>
    %57 = arith.cmpi eq, %19, %56 : vector<16x1xi32>
    %c1_i32_19 = arith.constant 1 : i32
    %58 = tpu.dynamic_rotate %53 by %c1_i32_19 dim 0 : vector<16x256xf32>, i32 -> vector<16x256xf32>
    %cst_20 = arith.constant 0.000000e+00 : f32
    %59 = vector.shape_cast %57 : vector<16x1xi1> to vector<16x1xi1>
    %60 = vector.broadcast %59 : vector<16x1xi1> to vector<16x256xi1>
    %61 = vector.broadcast %cst_20 : f32 to vector<16x256xf32>
    %62 = arith.select %60, %61, %58 : vector<16x256xi1>, vector<16x256xf32>
    %c15_i32_21 = arith.constant 15 : i32
    %63 = vector.broadcast %c15_i32_21 : i32 to vector<16x1xi32>
    %64 = arith.cmpi eq, %19, %63 : vector<16x1xi32>
    %c15_i32_22 = arith.constant 15 : i32
    %65 = tpu.dynamic_rotate %55 by %c15_i32_22 dim 0 : vector<16x256xf32>, i32 -> vector<16x256xf32>
    %cst_23 = arith.constant 0.000000e+00 : f32
    %66 = vector.shape_cast %64 : vector<16x1xi1> to vector<16x1xi1>
    %67 = vector.broadcast %66 : vector<16x1xi1> to vector<16x256xi1>
    %68 = vector.broadcast %cst_23 : f32 to vector<16x256xf32>
    %69 = arith.select %67, %68, %65 : vector<16x256xi1>, vector<16x256xf32>
    %70 = arith.addf %54, %62 : vector<16x256xf32>
    %71 = arith.addf %70, %69 : vector<16x256xf32>
    %72 = vector.broadcast %22 : vector<1x256xf32> to vector<16x256xf32>
    %73 = arith.addf %71, %72 : vector<16x256xf32>
    %74 = vector.shape_cast %73 : vector<16x256xf32> to vector<1x16x256xf32>
    %cst_24 = arith.constant dense<0.000000e+00> : vector<1x256xf32>
    %75 = vector.multi_reduction <add>, %74, %cst_24 [1] : vector<1x16x256xf32> to vector<1x256xf32>
    %c0_25 = arith.constant 0 : index
    %c0_26 = arith.constant 0 : index
    %76 = vector.load %arg5[%c0_25, %c0_26] : memref<256x4xf32, #tpu.memory_space<vmem>>, vector<256x4xf32>
    %cst_27 = arith.constant dense<0.000000e+00> : vector<1x4xf32>
    %77 = tpu.matmul %75, %76, %cst_27 {dimension_numbers = #tpu.dot_dimension_numbers<[1], [0], [0], [1], [0, 0, 1, 1], [], []>} : vector<1x256xf32>, vector<256x4xf32>, vector<1x4xf32> -> vector<1x4xf32>
    %78 = arith.addf %77, %24 : vector<1x4xf32>
    %cst_28 = arith.constant 0.000000e+00 : f32
    %79 = vector.broadcast %cst_28 : f32 to vector<1x4xf32>
    %80 = arith.maximumf %78, %79 : vector<1x4xf32>
    %c0_29 = arith.constant 0 : index
    %c0_30 = arith.constant 0 : index
    %81 = vector.load %arg6[%c0_29, %c0_30] : memref<4x256xf32, #tpu.memory_space<vmem>>, vector<4x256xf32>
    %cst_31 = arith.constant dense<0.000000e+00> : vector<1x256xf32>
    %82 = tpu.matmul %80, %81, %cst_31 {dimension_numbers = #tpu.dot_dimension_numbers<[1], [0], [0], [1], [0, 0, 1, 1], [], []>} : vector<1x4xf32>, vector<4x256xf32>, vector<1x256xf32> -> vector<1x256xf32>
    %83 = arith.addf %82, %23 : vector<1x256xf32>
    %84 = arith.negf %83 : vector<1x256xf32>
    %85 = math.exp %84 : vector<1x256xf32>
    %cst_32 = arith.constant 1.000000e+00 : f32
    %86 = vector.broadcast %cst_32 : f32 to vector<1x256xf32>
    %87 = arith.addf %86, %85 : vector<1x256xf32>
    %88 = arith.divf %86, %87 : vector<1x256xf32>
    %89 = vector.shape_cast %88 : vector<1x256xf32> to vector<1x1x256xf32>
    %90 = vector.broadcast %89 : vector<1x1x256xf32> to vector<1x16x256xf32>
    %91 = arith.mulf %74, %90 : vector<1x16x256xf32>
    %c0_33 = arith.constant 0 : index
    %c0_34 = arith.constant 0 : index
    %c0_35 = arith.constant 0 : index
    %92 = vector.load %arg1[%c0_33, %c0_34, %c0_35] : memref<1x16x256xf32, #tpu.memory_space<vmem>>, vector<1x16x256xf32>
    %93 = arith.addf %91, %92 : vector<1x16x256xf32>
    %c0_36 = arith.constant 0 : index
    %c0_37 = arith.constant 0 : index
    %c0_38 = arith.constant 0 : index
    %94 = vector.load %arg7[%c0_36, %c0_37, %c0_38] : memref<1x16x256xf32, #tpu.memory_space<vmem>>, vector<1x16x256xf32>
    tpu.vector_store %arg7[%c0_36, %c0_37, %c0_38], %93 {strides = array<i32>} : memref<1x16x256xf32, #tpu.memory_space<vmem>>, vector<1x16x256xf32>,
    return
  }
  func.func @transform_0(%arg0: i32) -> (i32, i32, i32) {
    %c0_i32 = arith.constant 0 : i32
    %c0_i32_0 = arith.constant 0 : i32
    %c0_i32_1 = arith.constant 0 : i32
    return %arg0, %c0_i32, %c0_i32_0 : i32, i32, i32
  }
  func.func @transform_1(%arg0: i32) -> (i32, i32) {
    %c0_i32 = arith.constant 0 : i32
    %c0_i32_0 = arith.constant 0 : i32
    %c0_i32_1 = arith.constant 0 : i32
    return %c0_i32, %c0_i32_0 : i32, i32
  }
  func.func @transform_2(%arg0: i32) -> (i32, i32) {
    %c0_i32 = arith.constant 0 : i32
    %c0_i32_0 = arith.constant 0 : i32
    %c0_i32_1 = arith.constant 0 : i32
    return %c0_i32, %c0_i32_0 : i32, i32
  }
  func.func @transform_3(%arg0: i32) -> (i32, i32) {
    %c0_i32 = arith.constant 0 : i32
    %c0_i32_0 = arith.constant 0 : i32
    %c0_i32_1 = arith.constant 0 : i32
    return %c0_i32, %c0_i32_0 : i32, i32
  }
  func.func @transform_4(%arg0: i32) -> (i32, i32) {
    %c0_i32 = arith.constant 0 : i32
    %c0_i32_0 = arith.constant 0 : i32
    %c0_i32_1 = arith.constant 0 : i32
    return %c0_i32, %c0_i32_0 : i32, i32
  }
  func.func @transform_5(%arg0: i32) -> (i32, i32) {
    %c0_i32 = arith.constant 0 : i32
    %c0_i32_0 = arith.constant 0 : i32
    %c0_i32_1 = arith.constant 0 : i32
    return %c0_i32, %c0_i32_0 : i32, i32
  }
  func.func @transform_6(%arg0: i32) -> (i32, i32, i32) {
    %c0_i32 = arith.constant 0 : i32
    %c0_i32_0 = arith.constant 0 : i32
    %c0_i32_1 = arith.constant 0 : i32
    return %arg0, %c0_i32, %c0_i32_0 : i32, i32, i32
  }
}

</mosaic_0001>

<llo_original>
// kernel: tpu_custom_call.1
$region0: #{tpu_custom_call.1}
  #allocation0 [shape = 'u32[]', space=smem, size = 0x4, offset = 0x4, fixed_abs, tag = 'smem constant byte address 0x4 - core index']
  #allocation1 [shape = 'u32[144,128]{1,0:T(1,128)}', space=vmem, size = 0x12000, scoped, tag = 'internal scratch']
  %s0 = inlined_call_operand.vmem [shape: f32[2,16,256], index: 0, kind: input, shape index: {}]
  %s1 = inlined_call_operand.hbm [shape: bf16[256,768], index: 1, kind: input, shape index: {}]
  %s2 = inlined_call_operand.hbm [shape: bf16[256,768], index: 2, kind: input, shape index: {}]
  %s3 = inlined_call_operand.vmem [shape: f32[4,256], index: 3, kind: input, shape index: {}]
  %s4 = inlined_call_operand.vmem [shape: f32[256,4], index: 4, kind: input, shape index: {}]
  %s5 = inlined_call_operand.vmem [shape: f32[4,256], index: 5, kind: input, shape index: {}]
  %s6 = inlined_call_operand.hbm [shape: f32[2,16,256], index: 6, kind: output, shape index: {}]
  %s7 = sld [smem:[#allocation0]]
  $region65: #{tpu_custom_call.1} parent=0
    _
  %s9 = ssub.s32 1, %s7
  %s10 = scalar_select 0, %s9, %s7
  $region1: #{tpu_custom_call.1} parent=0
    #allocation2 [shape = 'u8[393216]{0}', space=vmem, size = 0x60000, scoped, tag = 'input window, operand 1, single buffered']
    #allocation3 [shape = 's32[2]{0}', space=sflag, size = 0x8, scoped, tag = 'scoped memory for tpu_custom_call.1']
    #allocation4 [shape = 's32[2]{0}', space=sflag, size = 0x8, scoped, tag = 'scoped memory for tpu_custom_call.1']
    #allocation5 [shape = 'u8[393216]{0}', space=vmem, size = 0x60000, scoped, tag = 'input window, operand 2, single buffered']
    #allocation6 [shape = 's32[1]{0}', space=sflag, size = 0x4, scoped, tag = 'scoped memory for tpu_custom_call.1']
    #allocation7 [shape = 'u8[32768]{0}', space=vmem, size = 0x8000, scoped, tag = 'output window, operand 0']
    %11 = vsyncpa [#allocation3], 0
    %12 = vsyncpa [#allocation6], 0
    %13 = vsyncpa [#allocation4], 0
    %s14 = scalar_lea.sflag [#allocation4], 1
    %15 = vsyncpa %s14, 0
    loop: start=0, step=1, limit=4
    $region2: #{tpu_custom_call.1} parent=1 // loop_pre_header
      _
    $region3: #{tpu_custom_call.1} parent=1 // loop_header
      %s17 = sphi 0, %s21
      %p18 = scmp.ge.s32.totalorder %s17, 4
      %s27 = sphi 0, %s29
      %s30 = sphi 0, %s27
      %s31 = sphi 0, %s30
      %s47 = sphi 0, %s31
      %s51 = sphi 0, %s51
      %s53 = sphi 0, %s51
      %s54 = sphi 0, %s53
      %s68 = sphi 0, %s54
      %s72 = sphi 0, %s72
      %s74 = sphi 0, %s72
      %s75 = sphi 0, %s74
      %s89 = sphi 0, %s75
      %s93 = sphi 0, %s93
      %s95 = sphi 0, %s93
      %s96 = sphi 0, %s95
      %s110 = sphi 0, %s96
      %s114 = sphi 0, %s114
      %s116 = sphi 0, %s114
      %s117 = sphi 0, %s116
      %s131 = sphi 0, %s117
      %s135 = sphi 0, %s135
      %s137 = sphi 0, %s135
      %s138 = sphi 0, %s137
      %s152 = sphi 0, %s138
      %s158 = sphi 0, %s160
      %s161 = sphi 0, %s158
      %s162 = sphi 0, %s161
      %s178 = sphi 0, %s162
    $region4: #{tpu_custom_call.1} parent=1 // loop_header_branch
      %20 = sbr.rel (%p18) target = $region8
    $region5: #{tpu_custom_call.1} parent=1 // loop_body
      %s22 = ssub.s32 %s17, 1
      %s23 = ssub.s32 %s17, 2
      %s24 = sadd.s32 %s17, 1
      %s25 = ssub.s32 %s17, %s24
      %p26 = scmp.eq.s32.totalorder %s25, 0
      %s28 = sadd.s32 %s27, 1
      %s29 = scalar_select %p26, %s27, %s28
      %p32 = pneg %p26
      %p33 = scmp.eq.s32.totalorder %s17, 1
      %p34 = por %p32, %p33
      %p35 = scmp.ne.s32.totalorder %s27, %s30
      %p36 = scmp.eq.s32.totalorder %s17, 0
      %p37 = por %p35, %p36
      %p38 = scmp.ne.s32.totalorder %s27, %s30
      %p39 = scmp.eq.s32.totalorder %s22, 1
      %p40 = por %p38, %p39
      %p41 = scmp.ne.s32.totalorder %s30, %s31
      %p42 = scmp.eq.s32.totalorder %s22, 0
      %p43 = por %p41, %p42
      %p44 = scmp.ne.s32.totalorder %s30, %s31
      %p45 = scmp.eq.s32.totalorder %s23, 1
      %p46 = por %p44, %p45
      %p48 = scmp.ne.s32.totalorder %s31, %s47
      %p49 = scmp.eq.s32.totalorder %s23, 0
      %p50 = por %p48, %p49
      %s52 = sadd.s32 %s51, 1
      %p55 = scmp.eq.s32.totalorder %s17, 1
      %p56 = scmp.ne.s32.totalorder %s51, %s53
      %p57 = scmp.eq.s32.totalorder %s17, 0
      %p58 = por %p56, %p57
      %p59 = scmp.ne.s32.totalorder %s51, %s53
      %p60 = scmp.eq.s32.totalorder %s22, 1
      %p61 = por %p59, %p60
      %p62 = scmp.ne.s32.totalorder %s53, %s54
      %p63 = scmp.eq.s32.totalorder %s22, 0
      %p64 = por %p62, %p63
      %p65 = scmp.ne.s32.totalorder %s53, %s54
      %p66 = scmp.eq.s32.totalorder %s23, 1
      %p67 = por %p65, %p66
      %p69 = scmp.ne.s32.totalorder %s54, %s68
      %p70 = scmp.eq.s32.totalorder %s23, 0
      %p71 = por %p69, %p70
      %s73 = sadd.s32 %s72, 1
      %p76 = scmp.eq.s32.totalorder %s17, 1
      %p77 = scmp.ne.s32.totalorder %s72, %s74
      %p78 = scmp.eq.s32.totalorder %s17, 0
      %p79 = por %p77, %p78
      %p80 = scmp.ne.s32.totalorder %s72, %s74
      %p81 = scmp.eq.s32.totalorder %s22, 1
      %p82 = por %p80, %p81
      %p83 = scmp.ne.s32.totalorder %s74, %s75
      %p84 = scmp.eq.s32.totalorder %s22, 0
      %p85 = por %p83, %p84
      %p86 = scmp.ne.s32.totalorder %s74, %s75
      %p87 = scmp.eq.s32.totalorder %s23, 1
      %p88 = por %p86, %p87
      %p90 = scmp.ne.s32.totalorder %s75, %s89
      %p91 = scmp.eq.s32.totalorder %s23, 0
      %p92 = por %p90, %p91
      %s94 = sadd.s32 %s93, 1
      %p97 = scmp.eq.s32.totalorder %s17, 1
      %p98 = scmp.ne.s32.totalorder %s93, %s95
      %p99 = scmp.eq.s32.totalorder %s17, 0
      %p100 = por %p98, %p99
      %p101 = scmp.ne.s32.totalorder %s93, %s95
      %p102 = scmp.eq.s32.totalorder %s22, 1
      %p103 = por %p101, %p102
      %p104 = scmp.ne.s32.totalorder %s95, %s96
      %p105 = scmp.eq.s32.totalorder %s22, 0
      %p106 = por %p104, %p105
      %p107 = scmp.ne.s32.totalorder %s95, %s96
      %p108 = scmp.eq.s32.totalorder %s23, 1
      %p109 = por %p107, %p108
      %p111 = scmp.ne.s32.totalorder %s96, %s110
      %p112 = scmp.eq.s32.totalorder %s23, 0
      %p113 = por %p111, %p112
      %s115 = sadd.s32 %s114, 1
      %p118 = scmp.eq.s32.totalorder %s17, 1
      %p119 = scmp.ne.s32.totalorder %s114, %s116
      %p120 = scmp.eq.s32.totalorder %s17, 0
      %p121 = por %p119, %p120
      %p122 = scmp.ne.s32.totalorder %s114, %s116
      %p123 = scmp.eq.s32.totalorder %s22, 1
      %p124 = por %p122, %p123
      %p125 = scmp.ne.s32.totalorder %s116, %s117
      %p126 = scmp.eq.s32.totalorder %s22, 0
      %p127 = por %p125, %p126
      %p128 = scmp.ne.s32.totalorder %s116, %s117
      %p129 = scmp.eq.s32.totalorder %s23, 1
      %p130 = por %p128, %p129
      %p132 = scmp.ne.s32.totalorder %s117, %s131
      %p133 = scmp.eq.s32.totalorder %s23, 0
      %p134 = por %p132, %p133
      %s136 = sadd.s32 %s135, 1
      %p139 = scmp.eq.s32.totalorder %s17, 1
      %p140 = scmp.ne.s32.totalorder %s135, %s137
      %p141 = scmp.eq.s32.totalorder %s17, 0
      %p142 = por %p140, %p141
      %p143 = scmp.ne.s32.totalorder %s135, %s137
      %p144 = scmp.eq.s32.totalorder %s22, 1
      %p145 = por %p143, %p144
      %p146 = scmp.ne.s32.totalorder %s137, %s138
      %p147 = scmp.eq.s32.totalorder %s22, 0
      %p148 = por %p146, %p147
      %p149 = scmp.ne.s32.totalorder %s137, %s138
      %p150 = scmp.eq.s32.totalorder %s23, 1
      %p151 = por %p149, %p150
      %p153 = scmp.ne.s32.totalorder %s138, %s152
      %p154 = scmp.eq.s32.totalorder %s23, 0
      %p155 = por %p153, %p154
      %s156 = ssub.s32 %s17, %s24
      %p157 = scmp.eq.s32.totalorder %s156, 0
      %s159 = sadd.s32 %s158, 1
      %s160 = scalar_select %p157, %s158, %s159
      %p163 = pneg %p157
      %p164 = scmp.eq.s32.totalorder %s17, 1
      %p165 = por %p163, %p164
      %p166 = scmp.ne.s32.totalorder %s158, %s161
      %p167 = scmp.eq.s32.totalorder %s17, 0
      %p168 = por %p166, %p167
      %p169 = scmp.ne.s32.totalorder %s158, %s161
      %p170 = scmp.eq.s32.totalorder %s22, 1
      %p171 = por %p169, %p170
      %p172 = scmp.ne.s32.totalorder %s161, %s162
      %p173 = scmp.eq.s32.totalorder %s22, 0
      %p174 = por %p172, %p173
      %p175 = scmp.ne.s32.totalorder %s161, %s162
      %p176 = scmp.eq.s32.totalorder %s23, 1
      %p177 = por %p175, %p176
      %p179 = scmp.ne.s32.totalorder %s162, %s178
      %p180 = scmp.eq.s32.totalorder %s23, 0
      %p181 = por %p179, %p180
      %p182 = scmp.le.s32.totalorder 1, %s17
      %p183 = scmp.lt.s32.totalorder %s17, 3
      %p184 = pnand %p182, %p183
      %p185 = pneg %p184
      // Predicated region
      $region9: #{tpu_custom_call.1} parent=5 // pred_check
        _
      $region10: #{tpu_custom_call.1} parent=5 // pred_check_branch
        %187 = sbr.rel (%p184) target = $region12
      $region11: #{tpu_custom_call.1} parent=5 // pred_region
        %s188 = ssub.s32 %s17, 1
        // Predicated region
        $region13: #{tpu_custom_call.1} parent=11 // pred_check
          %p189 = pneg %p64
        $region14: #{tpu_custom_call.1} parent=11 // pred_check_branch
          %191 = sbr.rel (%p189) target = $region16
        $region15: #{tpu_custom_call.1} parent=11 // pred_region
          %s193 = ssub.s32 12288, 12288
          %194 = vsyncadd [#allocation3], %s193
          %s195 = sshll.u32 [#allocation2], 4
          %s196 = int_to_ptr.vmem [resolvable:$true] %s195
          %201 = dma.hbm_to_vmem [thread:$0]  %s1, 12288, %s196, [#allocation3], 384, 384, 24
        $region16: #{tpu_custom_call.1} parent=11 // pred_fallthru
          _
        // Predicated region
        $region17: #{tpu_custom_call.1} parent=11 // pred_check
          %p202 = pneg %p85
        $region18: #{tpu_custom_call.1} parent=11 // pred_check_branch
          %204 = sbr.rel (%p202) target = $region20
        $region19: #{tpu_custom_call.1} parent=11 // pred_region
          %s206 = ssub.s32 12288, 12288
          %207 = vsyncadd [#allocation6], %s206
          %s208 = sshll.u32 [#allocation5], 4
          %s209 = int_to_ptr.vmem [resolvable:$true] %s208
          %214 = dma.hbm_to_vmem [thread:$0]  %s2, 12288, %s209, [#allocation6], 384, 384, 24
        $region20: #{tpu_custom_call.1} parent=11 // pred_fallthru
          _
        // Predicated region
        $region21: #{tpu_custom_call.1} parent=11 // pred_check
          %p215 = pneg %p106
        $region22: #{tpu_custom_call.1} parent=11 // pred_check_branch
          %217 = sbr.rel (%p215) target = $region24
        $region23: #{tpu_custom_call.1} parent=11 // pred_region
          _
        $region24: #{tpu_custom_call.1} parent=11 // pred_fallthru
          _
        // Predicated region
        $region25: #{tpu_custom_call.1} parent=11 // pred_check
          %p218 = pneg %p127
        $region26: #{tpu_custom_call.1} parent=11 // pred_check_branch
          %220 = sbr.rel (%p218) target = $region28
        $region27: #{tpu_custom_call.1} parent=11 // pred_region
          _
        $region28: #{tpu_custom_call.1} parent=11 // pred_fallthru
          _
        // Predicated region
        $region29: #{tpu_custom_call.1} parent=11 // pred_check
          %p221 = pneg %p148
        $region30: #{tpu_custom_call.1} parent=11 // pred_check_branch
          %223 = sbr.rel (%p221) target = $region32
        $region31: #{tpu_custom_call.1} parent=11 // pred_region
          _
        $region32: #{tpu_custom_call.1} parent=11 // pred_fallthru
          _
      $region12: #{tpu_custom_call.1} parent=5 // pred_fallthru
        _
      %p224 = scmp.lt.s32.totalorder %s17, 2
      // Predicated region
      $region33: #{tpu_custom_call.1} parent=5 // pred_check
        %p225 = pneg %p224
      $region34: #{tpu_custom_call.1} parent=5 // pred_check_branch
        %227 = sbr.rel (%p225) target = $region36
      $region35: #{tpu_custom_call.1} parent=5 // pred_region
        // Predicated region
        $region37: #{tpu_custom_call.1} parent=35 // pred_check
          %p228 = pneg %p37
        $region38: #{tpu_custom_call.1} parent=35 // pred_check_branch
          %230 = sbr.rel (%p228) target = $region40
        $region39: #{tpu_custom_call.1} parent=35 // pred_region
          %p231 = scmp.lt.s32.totalorder %s17, 1
          %s232 = scalar_select %p231, %s17, 1
          %s233 = smul.addr %s232, 4
          %s234 = smul.addr %s233, 8
          %s235 = scalar_lea.vmem %s0, %s234
        $region40: #{tpu_custom_call.1} parent=35 // pred_fallthru
          _
      $region36: #{tpu_custom_call.1} parent=5 // pred_fallthru
        _
      %p236 = scmp.le.s32.totalorder 1, %s17
      %p237 = scmp.lt.s32.totalorder %s17, 3
      %p238 = pnand %p236, %p237
      %p239 = pneg %p238
      // Predicated region
      $region41: #{tpu_custom_call.1} parent=5 // pred_check
        _
      $region42: #{tpu_custom_call.1} parent=5 // pred_check_branch
        %241 = sbr.rel (%p238) target = $region44
      $region43: #{tpu_custom_call.1} parent=5 // pred_region
        %s242 = ssub.s32 %s17, 1
        // Predicated region
        $region45: #{tpu_custom_call.1} parent=43 // pred_check
          %p243 = pneg %p64
        $region46: #{tpu_custom_call.1} parent=43 // pred_check_branch
          %245 = sbr.rel (%p243) target = $region48
        $region47: #{tpu_custom_call.1} parent=43 // pred_region
          %246 = dma.done [#allocation3], 12288
        $region48: #{tpu_custom_call.1} parent=43 // pred_fallthru
          _
        // Predicated region
        $region49: #{tpu_custom_call.1} parent=43 // pred_check
          %p247 = pneg %p85
        $region50: #{tpu_custom_call.1} parent=43 // pred_check_branch
          %249 = sbr.rel (%p247) target = $region52
        $region51: #{tpu_custom_call.1} parent=43 // pred_region
          %250 = dma.done [#allocation6], 12288
        $region52: #{tpu_custom_call.1} parent=43 // pred_fallthru
          _
        %p251 = scmp.lt.s32.totalorder %s22, 1
        %s252 = scalar_select %p251, %s22, 1
        %s253 = smul.addr %s252, 4
        %s254 = smul.addr %s253, 8
        %s255 = scalar_lea.vmem %s0, %s254
        %p256 = pneg %p43
        %p257 = pneg %p40
        %p258 = pneg %p64
        %p259 = pneg %p61
        %p260 = pneg %p85
        %p261 = pneg %p82
        %p262 = pneg %p106
        %p263 = pneg %p103
        %p264 = pneg %p127
        %p265 = pneg %p124
        %p266 = pneg %p148
        %p267 = pneg %p145
        %p268 = pneg %p174
        %p269 = pneg %p171
        %s270 = sand.u32 %s161, 1
        %s271 = scalar_lea.sflag [#allocation4], %s270
        %s272 = sand.u32 %s161, 1
        %s273 = smul.addr %s272, 32
        %s274 = scalar_lea.vmem [#allocation7], %s273
        %p275 = scmp.lt.s32.totalorder %s22, 1
        %s276 = scalar_select %p275, %s22, 1
        %s277 = smul.addr %s276, 4
        %s278 = smul.addr %s277, 8
        %s279 = scalar_lea.vmem %s0, %s278
        %v280 = vld [vmem:[%s279] sm:$0xff]
        %v281 = vld [vmem:[%s279 + $0x8] sm:$0xff]
        %v282 = vld [vmem:[%s279 + $0x10] sm:$0xff]
        %v283 = vld [vmem:[%s279 + $0x18] sm:$0xff]
        %v284 = vpack.c.bf16 %v282, %v280
        %v285 = vpack.c.bf16 %v283, %v281
        %v286 = vlaneseq
        %v287 = vshrl.u32 %v286, 7
        %v288 = vadd.s32 %v287, 8
        %vm289 = vcmp.lt.s32.totalorder %v287, 0
        %v290 = vsub.s32 0, %v287
        %v291 = vsel %vm289, %v290, %v287
        %v292 = vshrl.u32 %v291, 4
        %v293 = vand.u32 %v291, 15
        %v294 = vsub.s32 0, %v293
        %v295 = vsel %vm289, %v294, %v293
        %vm296 = vcmp.lt.s32.totalorder %v288, 0
        %v297 = vsub.s32 0, %v288
        %v298 = vsel %vm296, %v297, %v288
        %v299 = vshrl.u32 %v298, 4
        %v300 = vand.u32 %v298, 15
        %v301 = vsub.s32 0, %v300
        %v302 = vsel %vm296, %v301, %v300
        %vm303 = vcmp.ne.s32.totalorder %v295, 0
        %vm304 = vcmp.ne.s32.totalorder %v302, 0
        %vm305 = vcmp.lt.s32.totalorder %v295, 0
        %vm306 = vcmp.lt.s32.totalorder %v302, 0
        %vm307 = vmand %vm305, %vm303
        %vm308 = vmand %vm306, %vm304
        %v309 = vadd.s32 %v295, 16
        %v310 = vadd.s32 %v302, 16
        %v311 = vsel %vm307, %v309, %v295
        %v312 = vsel %vm308, %v310, %v302
        %v313 = vld [vmem:[%s3] sm:$0xff]
        %v314 = vld [vmem:[#allocation2] sm:$0xff]
        %v315 = vld [vmem:[#allocation2 + $0x8] sm:$0xff]
        %v316 = vld [vmem:[#allocation2 + $0x10] sm:$0xff]
        %v317 = vld [vmem:[#allocation2 + $0x18] sm:$0xff]
        %v318 = vld [vmem:[#allocation2 + $0x20] sm:$0xff]
        %v319 = vld [vmem:[#allocation2 + $0x28] sm:$0xff]
        %v320 = vld [vmem:[#allocation2 + $0x30] sm:$0xff]
        %v321 = vld [vmem:[#allocation2 + $0x38] sm:$0xff]
        %v322 = vld [vmem:[#allocation2 + $0x40] sm:$0xff]
        %v323 = vld [vmem:[#allocation2 + $0x48] sm:$0xff]
        %v324 = vld [vmem:[#allocation2 + $0x50] sm:$0xff]
        %v325 = vld [vmem:[#allocation2 + $0x58] sm:$0xff]
        %v326 = vld [vmem:[#allocation2 + $0x60] sm:$0xff]
        %v327 = vld [vmem:[#allocation2 + $0x68] sm:$0xff]
        %v328 = vld [vmem:[#allocation2 + $0x70] sm:$0xff]
        %v329 = vld [vmem:[#allocation2 + $0x78] sm:$0xff]
        %v330 = vld [vmem:[#allocation2 + $0x80] sm:$0xff]
        %v331 = vld [vmem:[#allocation2 + $0x88] sm:$0xff]
        %v332 = vld [vmem:[#allocation2 + $0x90] sm:$0xff]
        %v333 = vld [vmem:[#allocation2 + $0x98] sm:$0xff]
        %v334 = vld [vmem:[#allocation2 + $0xa0] sm:$0xff]
        %v335 = vld [vmem:[#allocation2 + $0xa8] sm:$0xff]
        %v336 = vld [vmem:[#allocation2 + $0xb0] sm:$0xff]
        %v337 = vld [vmem:[#allocation2 + $0xb8] sm:$0xff]
        %v338 = vld [vmem:[#allocation2 + $0xc0] sm:$0xff]
        %v339 = vld [vmem:[#allocation2 + $0xc8] sm:$0xff]
        %v340 = vld [vmem:[#allocation2 + $0xd0] sm:$0xff]
        %v341 = vld [vmem:[#allocation2 + $0xd8] sm:$0xff]
        %v342 = vld [vmem:[#allocation2 + $0xe0] sm:$0xff]
        %v343 = vld [vmem:[#allocation2 + $0xe8] sm:$0xff]
        %v344 = vld [vmem:[#allocation2 + $0xf0] sm:$0xff]
        %v345 = vld [vmem:[#allocation2 + $0xf8] sm:$0xff]
        %v346 = vld [vmem:[#allocation2 + $0x100] sm:$0xff]
        %v347 = vld [vmem:[#allocation2 + $0x108] sm:$0xff]
        %v348 = vld [vmem:[#allocation2 + $0x110] sm:$0xff]
        %v349 = vld [vmem:[#allocation2 + $0x118] sm:$0xff]
        %v350 = vld [vmem:[#allocation2 + $0x120] sm:$0xff]
        %v351 = vld [vmem:[#allocation2 + $0x128] sm:$0xff]
        %v352 = vld [vmem:[#allocation2 + $0x130] sm:$0xff]
        %v353 = vld [vmem:[#allocation2 + $0x138] sm:$0xff]
        %v354 = vld [vmem:[#allocation2 + $0x140] sm:$0xff]
        %v355 = vld [vmem:[#allocation2 + $0x148] sm:$0xff]
        %v356 = vld [vmem:[#allocation2 + $0x150] sm:$0xff]
        %v357 = vld [vmem:[#allocation2 + $0x158] sm:$0xff]
        %v358 = vld [vmem:[#allocation2 + $0x160] sm:$0xff]
        %v359 = vld [vmem:[#allocation2 + $0x168] sm:$0xff]
        %v360 = vld [vmem:[#allocation2 + $0x170] sm:$0xff]
        %v361 = vld [vmem:[#allocation2 + $0x178] sm:$0xff]
        %v362 = vld [vmem:[#allocation2 + $0x180] sm:$0xff]
        %v363 = vld [vmem:[#allocation2 + $0x188] sm:$0xff]
        %v364 = vld [vmem:[#allocation2 + $0x190] sm:$0xff]
        %v365 = vld [vmem:[#allocation2 + $0x198] sm:$0xff]
        %v366 = vld [vmem:[#allocation2 + $0x1a0] sm:$0xff]
        %v367 = vld [vmem:[#allocation2 + $0x1a8] sm:$0xff]
        %v368 = vld [vmem:[#allocation2 + $0x1b0] sm:$0xff]
        %v369 = vld [vmem:[#allocation2 + $0x1b8] sm:$0xff]
        %v370 = vld [vmem:[#allocation2 + $0x1c0] sm:$0xff]
        %v371 = vld [vmem:[#allocation2 + $0x1c8] sm:$0xff]
        %v372 = vld [vmem:[#allocation2 + $0x1d0] sm:$0xff]
        %v373 = vld [vmem:[#allocation2 + $0x1d8] sm:$0xff]
        %v374 = vld [vmem:[#allocation2 + $0x1e0] sm:$0xff]
        %v375 = vld [vmem:[#allocation2 + $0x1e8] sm:$0xff]
        %v376 = vld [vmem:[#allocation2 + $0x1f0] sm:$0xff]
        %v377 = vld [vmem:[#allocation2 + $0x1f8] sm:$0xff]
        %v378 = vld [vmem:[#allocation2 + $0x200] sm:$0xff]
        %v379 = vld [vmem:[#allocation2 + $0x208] sm:$0xff]
        %v380 = vld [vmem:[#allocation2 + $0x210] sm:$0xff]
        %v381 = vld [vmem:[#allocation2 + $0x218] sm:$0xff]
        %v382 = vld [vmem:[#allocation2 + $0x220] sm:$0xff]
        %v383 = vld [vmem:[#allocation2 + $0x228] sm:$0xff]
        %v384 = vld [vmem:[#allocation2 + $0x230] sm:$0xff]
        %v385 = vld [vmem:[#allocation2 + $0x238] sm:$0xff]
        %v386 = vld [vmem:[#allocation2 + $0x240] sm:$0xff]
        %v387 = vld [vmem:[#allocation2 + $0x248] sm:$0xff]
        %v388 = vld [vmem:[#allocation2 + $0x250] sm:$0xff]
        %v389 = vld [vmem:[#allocation2 + $0x258] sm:$0xff]
        %v390 = vld [vmem:[#allocation2 + $0x260] sm:$0xff]
        %v391 = vld [vmem:[#allocation2 + $0x268] sm:$0xff]
        %v392 = vld [vmem:[#allocation2 + $0x270] sm:$0xff]
        %v393 = vld [vmem:[#allocation2 + $0x278] sm:$0xff]
        %v394 = vld [vmem:[#allocation2 + $0x280] sm:$0xff]
        %v395 = vld [vmem:[#allocation2 + $0x288] sm:$0xff]
        %v396 = vld [vmem:[#allocation2 + $0x290] sm:$0xff]
        %v397 = vld [vmem:[#allocation2 + $0x298] sm:$0xff]
        %v398 = vld [vmem:[#allocation2 + $0x2a0] sm:$0xff]
        %v399 = vld [vmem:[#allocation2 + $0x2a8] sm:$0xff]
        %v400 = vld [vmem:[#allocation2 + $0x2b0] sm:$0xff]
        %v401 = vld [vmem:[#allocation2 + $0x2b8] sm:$0xff]
        %v402 = vld [vmem:[#allocation2 + $0x2c0] sm:$0xff]
        %v403 = vld [vmem:[#allocation2 + $0x2c8] sm:$0xff]
        %v404 = vld [vmem:[#allocation2 + $0x2d0] sm:$0xff]
        %v405 = vld [vmem:[#allocation2 + $0x2d8] sm:$0xff]
        %v406 = vld [vmem:[#allocation2 + $0x2e0] sm:$0xff]
        %v407 = vld [vmem:[#allocation2 + $0x2e8] sm:$0xff]
        %v408 = vld [vmem:[#allocation2 + $0x2f0] sm:$0xff]
        %v409 = vld [vmem:[#allocation2 + $0x2f8] sm:$0xff]
        %v506 = vunpack.c.l.b16 %v314
        %v507 = vunpack.c.h.b16 %v314
        %v508 = vunpack.c.l.b16 %v315
        %v509 = vunpack.c.h.b16 %v315
        %v510 = vunpack.c.l.b16 %v316
        %v511 = vunpack.c.h.b16 %v316
        %v512 = vunpack.c.l.b16 %v317
        %v513 = vunpack.c.h.b16 %v317
        %v514 = vunpack.c.l.b16 %v318
        %v515 = vunpack.c.h.b16 %v318
        %v516 = vunpack.c.l.b16 %v319
        %v517 = vunpack.c.h.b16 %v319
        %v518 = vunpack.c.l.b16 %v320
        %v519 = vunpack.c.h.b16 %v320
        %v520 = vunpack.c.l.b16 %v321
        %v521 = vunpack.c.h.b16 %v321
        %v522 = vunpack.c.l.b16 %v322
        %v523 = vunpack.c.h.b16 %v322
        %v524 = vunpack.c.l.b16 %v323
        %v525 = vunpack.c.h.b16 %v323
        %v526 = vunpack.c.l.b16 %v324
        %v527 = vunpack.c.h.b16 %v324
        %v528 = vunpack.c.l.b16 %v325
        %v529 = vunpack.c.h.b16 %v325
        %v530 = vunpack.c.l.b16 %v326
        %v531 = vunpack.c.h.b16 %v326
        %v532 = vunpack.c.l.b16 %v327
        %v533 = vunpack.c.h.b16 %v327
        %v534 = vunpack.c.l.b16 %v328
        %v535 = vunpack.c.h.b16 %v328
        %v536 = vunpack.c.l.b16 %v329
        %v537 = vunpack.c.h.b16 %v329
        %v538 = vunpack.c.l.b16 %v330
        %v539 = vunpack.c.h.b16 %v330
        %v540 = vunpack.c.l.b16 %v331
        %v541 = vunpack.c.h.b16 %v331
        %v542 = vunpack.c.l.b16 %v332
        %v543 = vunpack.c.h.b16 %v332
        %v544 = vunpack.c.l.b16 %v333
        %v545 = vunpack.c.h.b16 %v333
        %v546 = vunpack.c.l.b16 %v334
        %v547 = vunpack.c.h.b16 %v334
        %v548 = vunpack.c.l.b16 %v335
        %v549 = vunpack.c.h.b16 %v335
        %v550 = vunpack.c.l.b16 %v336
        %v551 = vunpack.c.h.b16 %v336
        %v552 = vunpack.c.l.b16 %v337
        %v553 = vunpack.c.h.b16 %v337
        %v554 = vunpack.c.l.b16 %v338
        %v555 = vunpack.c.h.b16 %v338
        %v556 = vunpack.c.l.b16 %v339
        %v557 = vunpack.c.h.b16 %v339
        %v558 = vunpack.c.l.b16 %v340
        %v559 = vunpack.c.h.b16 %v340
        %v560 = vunpack.c.l.b16 %v341
        %v561 = vunpack.c.h.b16 %v341
        %v562 = vunpack.c.l.b16 %v342
        %v563 = vunpack.c.h.b16 %v342
        %v564 = vunpack.c.l.b16 %v343
        %v565 = vunpack.c.h.b16 %v343
        %v566 = vunpack.c.l.b16 %v344
        %v567 = vunpack.c.h.b16 %v344
        %v568 = vunpack.c.l.b16 %v345
        %v569 = vunpack.c.h.b16 %v345
        %v570 = vunpack.c.l.b16 %v346
        %v571 = vunpack.c.h.b16 %v346
        %v572 = vunpack.c.l.b16 %v347
        %v573 = vunpack.c.h.b16 %v347
        %v574 = vunpack.c.l.b16 %v348
        %v575 = vunpack.c.h.b16 %v348
        %v576 = vunpack.c.l.b16 %v349
        %v577 = vunpack.c.h.b16 %v349
        %v578 = vunpack.c.l.b16 %v350
        %v579 = vunpack.c.h.b16 %v350
        %v580 = vunpack.c.l.b16 %v351
        %v581 = vunpack.c.h.b16 %v351
        %v582 = vunpack.c.l.b16 %v352
        %v583 = vunpack.c.h.b16 %v352
        %v584 = vunpack.c.l.b16 %v353
        %v585 = vunpack.c.h.b16 %v353
        %v586 = vunpack.c.l.b16 %v354
        %v587 = vunpack.c.h.b16 %v354
        %v588 = vunpack.c.l.b16 %v355
        %v589 = vunpack.c.h.b16 %v355
        %v590 = vunpack.c.l.b16 %v356
        %v591 = vunpack.c.h.b16 %v356
        %v592 = vunpack.c.l.b16 %v357
        %v593 = vunpack.c.h.b16 %v357
        %v594 = vunpack.c.l.b16 %v358
        %v595 = vunpack.c.h.b16 %v358
        %v596 = vunpack.c.l.b16 %v359
        %v597 = vunpack.c.h.b16 %v359
        %v598 = vunpack.c.l.b16 %v360
        %v599 = vunpack.c.h.b16 %v360
        %v600 = vunpack.c.l.b16 %v361
        %v601 = vunpack.c.h.b16 %v361
        %v602 = vunpack.c.l.b16 %v362
        %v603 = vunpack.c.h.b16 %v362
        %v604 = vunpack.c.l.b16 %v363
        %v605 = vunpack.c.h.b16 %v363
        %v606 = vunpack.c.l.b16 %v364
        %v607 = vunpack.c.h.b16 %v364
        %v608 = vunpack.c.l.b16 %v365
        %v609 = vunpack.c.h.b16 %v365
        %v610 = vunpack.c.l.b16 %v366
        %v611 = vunpack.c.h.b16 %v366
        %v612 = vunpack.c.l.b16 %v367
        %v613 = vunpack.c.h.b16 %v367
        %v614 = vunpack.c.l.b16 %v368
        %v615 = vunpack.c.h.b16 %v368
        %v616 = vunpack.c.l.b16 %v369
        %v617 = vunpack.c.h.b16 %v369
        %v618 = vunpack.c.l.b16 %v370
        %v619 = vunpack.c.h.b16 %v370
        %v620 = vunpack.c.l.b16 %v371
        %v621 = vunpack.c.h.b16 %v371
        %v622 = vunpack.c.l.b16 %v372
        %v623 = vunpack.c.h.b16 %v372
        %v624 = vunpack.c.l.b16 %v373
        %v625 = vunpack.c.h.b16 %v373
        %v626 = vunpack.c.l.b16 %v374
        %v627 = vunpack.c.h.b16 %v374
        %v628 = vunpack.c.l.b16 %v375
        %v629 = vunpack.c.h.b16 %v375
        %v630 = vunpack.c.l.b16 %v376
        %v631 = vunpack.c.h.b16 %v376
        %v632 = vunpack.c.l.b16 %v377
        %v633 = vunpack.c.h.b16 %v377
        %v634 = vunpack.c.l.b16 %v378
        %v635 = vunpack.c.h.b16 %v378
        %v636 = vunpack.c.l.b16 %v379
        %v637 = vunpack.c.h.b16 %v379
        %v638 = vunpack.c.l.b16 %v380
        %v639 = vunpack.c.h.b16 %v380
        %v640 = vunpack.c.l.b16 %v381
        %v641 = vunpack.c.h.b16 %v381
        %v642 = vunpack.c.l.b16 %v382
        %v643 = vunpack.c.h.b16 %v382
        %v644 = vunpack.c.l.b16 %v383
        %v645 = vunpack.c.h.b16 %v383
        %v646 = vunpack.c.l.b16 %v384
        %v647 = vunpack.c.h.b16 %v384
        %v648 = vunpack.c.l.b16 %v385
        %v649 = vunpack.c.h.b16 %v385
        %v650 = vunpack.c.l.b16 %v386
        %v651 = vunpack.c.h.b16 %v386
        %v652 = vunpack.c.l.b16 %v387
        %v653 = vunpack.c.h.b16 %v387
        %v654 = vunpack.c.l.b16 %v388
        %v655 = vunpack.c.h.b16 %v388
        %v656 = vunpack.c.l.b16 %v389
        %v657 = vunpack.c.h.b16 %v389
        %v658 = vunpack.c.l.b16 %v390
        %v659 = vunpack.c.h.b16 %v390
        %v660 = vunpack.c.l.b16 %v391
        %v661 = vunpack.c.h.b16 %v391
        %v662 = vunpack.c.l.b16 %v392
        %v663 = vunpack.c.h.b16 %v392
        %v664 = vunpack.c.l.b16 %v393
        %v665 = vunpack.c.h.b16 %v393
        %v666 = vunpack.c.l.b16 %v394
        %v667 = vunpack.c.h.b16 %v394
        %v668 = vunpack.c.l.b16 %v395
        %v669 = vunpack.c.h.b16 %v395
        %v670 = vunpack.c.l.b16 %v396
        %v671 = vunpack.c.h.b16 %v396
        %v672 = vunpack.c.l.b16 %v397
        %v673 = vunpack.c.h.b16 %v397
        %v674 = vunpack.c.l.b16 %v398
        %v675 = vunpack.c.h.b16 %v398
        %v676 = vunpack.c.l.b16 %v399
        %v677 = vunpack.c.h.b16 %v399
        %v678 = vunpack.c.l.b16 %v400
        %v679 = vunpack.c.h.b16 %v400
        %v680 = vunpack.c.l.b16 %v401
        %v681 = vunpack.c.h.b16 %v401
        %v682 = vunpack.c.l.b16 %v402
        %v683 = vunpack.c.h.b16 %v402
        %v684 = vunpack.c.l.b16 %v403
        %v685 = vunpack.c.h.b16 %v403
        %v686 = vunpack.c.l.b16 %v404
        %v687 = vunpack.c.h.b16 %v404
        %v688 = vunpack.c.l.b16 %v405
        %v689 = vunpack.c.h.b16 %v405
        %v690 = vunpack.c.l.b16 %v406
        %v691 = vunpack.c.h.b16 %v406
        %v692 = vunpack.c.l.b16 %v407
        %v693 = vunpack.c.h.b16 %v407
        %v694 = vunpack.c.l.b16 %v408
        %v695 = vunpack.c.h.b16 %v408
        %v696 = vunpack.c.l.b16 %v409
        %v697 = vunpack.c.h.b16 %v409
        %v698 = vpack.c.b16 %v512, %v506
        %v699 = vpack.c.b16 %v513, %v507
        %v700 = vpack.c.b16 %v514, %v508
        %v701 = vpack.c.b16 %v515, %v509
        %v702 = vpack.c.b16 %v516, %v510
        %v703 = vpack.c.b16 %v517, %v511
        %v704 = vpack.c.b16 %v524, %v518
        %v705 = vpack.c.b16 %v525, %v519
        %v706 = vpack.c.b16 %v526, %v520
        %v707 = vpack.c.b16 %v527, %v521
        %v708 = vpack.c.b16 %v528, %v522
        %v709 = vpack.c.b16 %v529, %v523
        %v710 = vpack.c.b16 %v536, %v530
        %v711 = vpack.c.b16 %v537, %v531
        %v712 = vpack.c.b16 %v538, %v532
        %v713 = vpack.c.b16 %v539, %v533
        %v714 = vpack.c.b16 %v540, %v534
        %v715 = vpack.c.b16 %v541, %v535
        %v716 = vpack.c.b16 %v548, %v542
        %v717 = vpack.c.b16 %v549, %v543
        %v718 = vpack.c.b16 %v550, %v544
        %v719 = vpack.c.b16 %v551, %v545
        %v720 = vpack.c.b16 %v552, %v546
        %v721 = vpack.c.b16 %v553, %v547
        %v722 = vpack.c.b16 %v560, %v554
        %v723 = vpack.c.b16 %v561, %v555
        %v724 = vpack.c.b16 %v562, %v556
        %v725 = vpack.c.b16 %v563, %v557
        %v726 = vpack.c.b16 %v564, %v558
        %v727 = vpack.c.b16 %v565, %v559
        %v728 = vpack.c.b16 %v572, %v566
        %v729 = vpack.c.b16 %v573, %v567
        %v730 = vpack.c.b16 %v574, %v568
        %v731 = vpack.c.b16 %v575, %v569
        %v732 = vpack.c.b16 %v576, %v570
        %v733 = vpack.c.b16 %v577, %v571
        %v734 = vpack.c.b16 %v584, %v578
        %v735 = vpack.c.b16 %v585, %v579
        %v736 = vpack.c.b16 %v586, %v580
        %v737 = vpack.c.b16 %v587, %v581
        %v738 = vpack.c.b16 %v588, %v582
        %v739 = vpack.c.b16 %v589, %v583
        %v740 = vpack.c.b16 %v596, %v590
        %v741 = vpack.c.b16 %v597, %v591
        %v742 = vpack.c.b16 %v598, %v592
        %v743 = vpack.c.b16 %v599, %v593
        %v744 = vpack.c.b16 %v600, %v594
        %v745 = vpack.c.b16 %v601, %v595
        %v746 = vpack.c.b16 %v608, %v602
        %v747 = vpack.c.b16 %v609, %v603
        %v748 = vpack.c.b16 %v610, %v604
        %v749 = vpack.c.b16 %v611, %v605
        %v750 = vpack.c.b16 %v612, %v606
        %v751 = vpack.c.b16 %v613, %v607
        %v752 = vpack.c.b16 %v620, %v614
        %v753 = vpack.c.b16 %v621, %v615
        %v754 = vpack.c.b16 %v622, %v616
        %v755 = vpack.c.b16 %v623, %v617
        %v756 = vpack.c.b16 %v624, %v618
        %v757 = vpack.c.b16 %v625, %v619
        %v758 = vpack.c.b16 %v632, %v626
        %v759 = vpack.c.b16 %v633, %v627
        %v760 = vpack.c.b16 %v634, %v628
        %v761 = vpack.c.b16 %v635, %v629
        %v762 = vpack.c.b16 %v636, %v630
        %v763 = vpack.c.b16 %v637, %v631
        %v764 = vpack.c.b16 %v644, %v638
        %v765 = vpack.c.b16 %v645, %v639
        %v766 = vpack.c.b16 %v646, %v640
        %v767 = vpack.c.b16 %v647, %v641
        %v768 = vpack.c.b16 %v648, %v642
        %v769 = vpack.c.b16 %v649, %v643
        %v770 = vpack.c.b16 %v656, %v650
        %v771 = vpack.c.b16 %v657, %v651
        %v772 = vpack.c.b16 %v658, %v652
        %v773 = vpack.c.b16 %v659, %v653
        %v774 = vpack.c.b16 %v660, %v654
        %v775 = vpack.c.b16 %v661, %v655
        %v776 = vpack.c.b16 %v668, %v662
        %v777 = vpack.c.b16 %v669, %v663
        %v778 = vpack.c.b16 %v670, %v664
        %v779 = vpack.c.b16 %v671, %v665
        %v780 = vpack.c.b16 %v672, %v666
        %v781 = vpack.c.b16 %v673, %v667
        %v782 = vpack.c.b16 %v680, %v674
        %v783 = vpack.c.b16 %v681, %v675
        %v784 = vpack.c.b16 %v682, %v676
        %v785 = vpack.c.b16 %v683, %v677
        %v786 = vpack.c.b16 %v684, %v678
        %v787 = vpack.c.b16 %v685, %v679
        %v788 = vpack.c.b16 %v692, %v686
        %v789 = vpack.c.b16 %v693, %v687
        %v790 = vpack.c.b16 %v694, %v688
        %v791 = vpack.c.b16 %v695, %v689
        %v792 = vpack.c.b16 %v696, %v690
        %v793 = vpack.c.b16 %v697, %v691
        %890 = vmatprep.subr.bf16.mxu0 %v699
        %891 = vmatpush1.bf16.msra.mxu0 %v698
        %892 = vmatprep.subr.bf16.mxu0 %v705
        %893 = vmatpush1.bf16.msra.mxu0 %v704
        %894 = vmatprep.subr.bf16.mxu0 %v711
        %895 = vmatpush1.bf16.msra.mxu0 %v710
        %896 = vmatprep.subr.bf16.mxu0 %v717
        %897 = vmatpush1.bf16.msra.mxu0 %v716
        %898 = vmatprep.subr.bf16.mxu0 %v723
        %899 = vmatpush1.bf16.msra.mxu0 %v722
        %900 = vmatprep.subr.bf16.mxu0 %v729
        %901 = vmatpush1.bf16.msra.mxu0 %v728
        %902 = vmatprep.subr.bf16.mxu0 %v735
        %903 = vmatpush1.bf16.msra.mxu0 %v734
        %904 = vmatprep.subr.bf16.mxu0 %v741
        %905 = vmatpush1.bf16.msra.mxu0 %v740
        %906 = vmatprep.subr.bf16.mxu0 %v747
        %907 = vmatpush1.bf16.msra.mxu0 %v746
        %908 = vmatprep.subr.bf16.mxu0 %v753
        %909 = vmatpush1.bf16.msra.mxu0 %v752
        %910 = vmatprep.subr.bf16.mxu0 %v759
        %911 = vmatpush1.bf16.msra.mxu0 %v758
        %912 = vmatprep.subr.bf16.mxu0 %v765
        %913 = vmatpush1.bf16.msra.mxu0 %v764
        %914 = vmatprep.subr.bf16.mxu0 %v771
        %915 = vmatpush1.bf16.msra.mxu0 %v770
        %916 = vmatprep.subr.bf16.mxu0 %v777
        %917 = vmatpush1.bf16.msra.mxu0 %v776
        %918 = vmatprep.subr.bf16.mxu0 %v783
        %919 = vmatpush1.bf16.msra.mxu0 %v782
        %920 = vmatprep.subr.bf16.mxu0 %v789
        %921 = vmatpush1.bf16.msra.mxu0 %v788
        %922 = vmatprep.mubr.bf16.mxu0 %v285
        %923 = vmatmul.mubr.bf16.gmra.mrb[0].mxu0 %v284
        %v924 = vpop.f32.mrb[0].mxu0
        %v925 = vadd.f32 0.0, %v924
        %v926 = vpop.f32.mrb[0].mxu0
        %v927 = vadd.f32 0.0, %v926
        %v928 = vpop.f32.mrb[0].mxu0
        %v929 = vadd.f32 0.0, %v928
        %v930 = vpop.f32.mrb[0].mxu0
        %v931 = vadd.f32 0.0, %v930
        %932 = vdwg.mxu0
        %933 = vmatprep.subr.bf16.mxu0 %v701
        %934 = vmatpush1.bf16.msra.mxu0 %v700
        %935 = vmatprep.subr.bf16.mxu0 %v707
        %936 = vmatpush1.bf16.msra.mxu0 %v706
        %937 = vmatprep.subr.bf16.mxu0 %v713
        %938 = vmatpush1.bf16.msra.mxu0 %v712
        %939 = vmatprep.subr.bf16.mxu0 %v719
        %940 = vmatpush1.bf16.msra.mxu0 %v718
        %941 = vmatprep.subr.bf16.mxu0 %v725
        %942 = vmatpush1.bf16.msra.mxu0 %v724
        %943 = vmatprep.subr.bf16.mxu0 %v731
        %944 = vmatpush1.bf16.msra.mxu0 %v730
        %945 = vmatprep.subr.bf16.mxu0 %v737
        %946 = vmatpush1.bf16.msra.mxu0 %v736
        %947 = vmatprep.subr.bf16.mxu0 %v743
        %948 = vmatpush1.bf16.msra.mxu0 %v742
        %949 = vmatprep.subr.bf16.mxu0 %v749
        %950 = vmatpush1.bf16.msra.mxu0 %v748
        %951 = vmatprep.subr.bf16.mxu0 %v755
        %952 = vmatpush1.bf16.msra.mxu0 %v754
        %953 = vmatprep.subr.bf16.mxu0 %v761
        %954 = vmatpush1.bf16.msra.mxu0 %v760
        %955 = vmatprep.subr.bf16.mxu0 %v767
        %956 = vmatpush1.bf16.msra.mxu0 %v766
        %957 = vmatprep.subr.bf16.mxu0 %v773
        %958 = vmatpush1.bf16.msra.mxu0 %v772
        %959 = vmatprep.subr.bf16.mxu0 %v779
        %960 = vmatpush1.bf16.msra.mxu0 %v778
        %961 = vmatprep.subr.bf16.mxu0 %v785
        %962 = vmatpush1.bf16.msra.mxu0 %v784
        %963 = vmatprep.subr.bf16.mxu0 %v791
        %964 = vmatpush1.bf16.msra.mxu0 %v790
        %965 = vmatprep.mubr.bf16.mxu0 %v285
        %966 = vmatmul.mubr.bf16.gmra.mrb[0].mxu0 %v284
        %v967 = vpop.f32.mrb[0].mxu0
        %v968 = vadd.f32 0.0, %v967
        %v969 = vpop.f32.mrb[0].mxu0
        %v970 = vadd.f32 0.0, %v969
        %v971 = vpop.f32.mrb[0].mxu0
        %v972 = vadd.f32 0.0, %v971
        %v973 = vpop.f32.mrb[0].mxu0
        %v974 = vadd.f32 0.0, %v973
        %975 = vdwg.mxu0
        %976 = vmatprep.subr.bf16.mxu0 %v703
        %977 = vmatpush1.bf16.msra.mxu0 %v702
        %978 = vmatprep.subr.bf16.mxu0 %v709
        %979 = vmatpush1.bf16.msra.mxu0 %v708
        %980 = vmatprep.subr.bf16.mxu0 %v715
        %981 = vmatpush1.bf16.msra.mxu0 %v714
        %982 = vmatprep.subr.bf16.mxu0 %v721
        %983 = vmatpush1.bf16.msra.mxu0 %v720
        %984 = vmatprep.subr.bf16.mxu0 %v727
        %985 = vmatpush1.bf16.msra.mxu0 %v726
        %986 = vmatprep.subr.bf16.mxu0 %v733
        %987 = vmatpush1.bf16.msra.mxu0 %v732
        %988 = vmatprep.subr.bf16.mxu0 %v739
        %989 = vmatpush1.bf16.msra.mxu0 %v738
        %990 = vmatprep.subr.bf16.mxu0 %v745
        %991 = vmatpush1.bf16.msra.mxu0 %v744
        %992 = vmatprep.subr.bf16.mxu0 %v751
        %993 = vmatpush1.bf16.msra.mxu0 %v750
        %994 = vmatprep.subr.bf16.mxu0 %v757
        %995 = vmatpush1.bf16.msra.mxu0 %v756
        %996 = vmatprep.subr.bf16.mxu0 %v763
        %997 = vmatpush1.bf16.msra.mxu0 %v762
        %998 = vmatprep.subr.bf16.mxu0 %v769
        %999 = vmatpush1.bf16.msra.mxu0 %v768
        %1000 = vmatprep.subr.bf16.mxu0 %v775
        %1001 = vmatpush1.bf16.msra.mxu0 %v774
        %1002 = vmatprep.subr.bf16.mxu0 %v781
        %1003 = vmatpush1.bf16.msra.mxu0 %v780
        %1004 = vmatprep.subr.bf16.mxu0 %v787
        %1005 = vmatpush1.bf16.msra.mxu0 %v786
        %1006 = vmatprep.subr.bf16.mxu0 %v793
        %1007 = vmatpush1.bf16.msra.mxu0 %v792
        %1008 = vmatprep.mubr.bf16.mxu0 %v285
        %1009 = vmatmul.mubr.bf16.gmra.mrb[0].mxu0 %v284
        %v1010 = vpop.f32.mrb[0].mxu0
        %v1011 = vadd.f32 0.0, %v1010
        %v1012 = vpop.f32.mrb[0].mxu0
        %v1013 = vadd.f32 0.0, %v1012
        %v1014 = vpop.f32.mrb[0].mxu0
        %v1015 = vadd.f32 0.0, %v1014
        %v1016 = vpop.f32.mrb[0].mxu0
        %v1017 = vadd.f32 0.0, %v1016
        %1018 = vdwg.mxu0
        %vm1019 = vcmp.eq.s32.totalorder %v311, 0
        %vm1020 = vcmp.eq.s32.totalorder %v312, 0
        %v1021 = vrot.slane %v925, 7
        %v1022 = vrot.slane %v927, 7
        %v1023 = vrot.slane %v929, 7
        %v1024 = vrot.slane %v931, 7
        %vm1025 = vcmp.lt.s32.totalorder %v287, 1
        %v1026 = vsel %vm1025, %v1021, %v1023
        %v1027 = vsel %vm1025, %v1022, %v1024
        %v1028 = vsel %vm1025, %v1023, %v1021
        %v1029 = vsel %vm1025, %v1024, %v1022
        %v1030 = vsel %vm1019, 1, 0
        %v1031 = vsel %vm1020, 1, 0
        %vm1032 = vcmp.eq.s32.totalorder %v1030, 1
        %vm1033 = vcmp.eq.s32.totalorder %v1031, 1
        %v1034 = vsel %vm1032, 0.0, %v1028
        %v1035 = vsel %vm1032, 0.0, %v1029
        %v1036 = vsel %vm1033, 0.0, %v1026
        %v1037 = vsel %vm1033, 0.0, %v1027
        %vm1038 = vcmp.eq.s32.totalorder %v311, 15
        %vm1039 = vcmp.eq.s32.totalorder %v312, 15
        %v1040 = vrot.slane %v1011, 1
        %v1041 = vrot.slane %v1013, 1
        %v1042 = vrot.slane %v1015, 1
        %v1043 = vrot.slane %v1017, 1
        %vm1044 = vcmp.lt.s32.totalorder %v287, 7
        %v1045 = vsel %vm1044, %v1040, %v1042
        %v1046 = vsel %vm1044, %v1041, %v1043
        %v1047 = vsel %vm1044, %v1042, %v1040
        %v1048 = vsel %vm1044, %v1043, %v1041
        %v1049 = vsel %vm1038, 1, 0
        %v1050 = vsel %vm1039, 1, 0
        %vm1051 = vcmp.eq.s32.totalorder %v1049, 1
        %vm1052 = vcmp.eq.s32.totalorder %v1050, 1
        %v1053 = vsel %vm1051, 0.0, %v1045
        %v1054 = vsel %vm1051, 0.0, %v1046
        %v1055 = vsel %vm1052, 0.0, %v1047
        %v1056 = vsel %vm1052, 0.0, %v1048
        %v1057 = vadd.f32 %v968, %v1034
        %v1058 = vadd.f32 %v970, %v1035
        %v1059 = vadd.f32 %v972, %v1036
        %v1060 = vadd.f32 %v974, %v1037
        %v1061 = vadd.f32 %v1057, %v1053
        %v1062 = vadd.f32 %v1058, %v1054
        %v1063 = vadd.f32 %v1059, %v1055
        %v1064 = vadd.f32 %v1060, %v1056
        %v1066 = vlaneseq
        %v1067 = vshrl.u32 %v1066, 7
        %v1068 = vsub.s32 0, %v1067
        %v1069 = vrot.slane %v313, %v1068
        %v1070 = vlaneseq
        %v1071 = vshrl.u32 %v1070, 7
        %v1072 = vsub.s32 4, %v1071
        %v1073 = vrot.slane %v313, %v1072
        %v1076 = vlaneseq
        %v1077 = vshrl.u32 %v1076, 7
        %v1078 = vsub.s32 0, %v1077
        %v1079 = vrot.slane %v1069, %v1078
        %v1080 = vlaneseq
        %v1081 = vshrl.u32 %v1080, 7
        %v1082 = vsub.s32 0, %v1081
        %v1083 = vrot.slane %v1073, %v1082
        %v1084 = vadd.f32 %v1061, %v1079
        %v1085 = vadd.f32 %v1062, %v1083
        %v1086 = vadd.f32 %v1063, %v1079
        %v1087 = vadd.f32 %v1064, %v1083
        %v1088 = vmax.f32 %v1084, 0.0
        %v1089 = vmax.f32 %v1085, 0.0
        %v1090 = vmax.f32 %v1086, 0.0
        %v1091 = vmax.f32 %v1087, 0.0
        %v1092 = vpack.c.bf16 %v1090, %v1088
        %v1093 = vpack.c.bf16 %v1091, %v1089
        %v1094 = vld [vmem:[#allocation5] sm:$0xff]
        %v1095 = vld [vmem:[#allocation5 + $0x8] sm:$0xff]
        %v1096 = vld [vmem:[#allocation5 + $0x10] sm:$0xff]
        %v1097 = vld [vmem:[#allocation5 + $0x18] sm:$0xff]
        %v1098 = vld [vmem:[#allocation5 + $0x20] sm:$0xff]
        %v1099 = vld [vmem:[#allocation5 + $0x28] sm:$0xff]
        %v1100 = vld [vmem:[#allocation5 + $0x30] sm:$0xff]
        %v1101 = vld [vmem:[#allocation5 + $0x38] sm:$0xff]
        %v1102 = vld [vmem:[#allocation5 + $0x40] sm:$0xff]
        %v1103 = vld [vmem:[#allocation5 + $0x48] sm:$0xff]
        %v1104 = vld [vmem:[#allocation5 + $0x50] sm:$0xff]
        %v1105 = vld [vmem:[#allocation5 + $0x58] sm:$0xff]
        %v1106 = vld [vmem:[#allocation5 + $0x60] sm:$0xff]
        %v1107 = vld [vmem:[#allocation5 + $0x68] sm:$0xff]
        %v1108 = vld [vmem:[#allocation5 + $0x70] sm:$0xff]
        %v1109 = vld [vmem:[#allocation5 + $0x78] sm:$0xff]
        %v1110 = vld [vmem:[#allocation5 + $0x80] sm:$0xff]
        %v1111 = vld [vmem:[#allocation5 + $0x88] sm:$0xff]
        %v1112 = vld [vmem:[#allocation5 + $0x90] sm:$0xff]
        %v1113 = vld [vmem:[#allocation5 + $0x98] sm:$0xff]
        %v1114 = vld [vmem:[#allocation5 + $0xa0] sm:$0xff]
        %v1115 = vld [vmem:[#allocation5 + $0xa8] sm:$0xff]
        %v1116 = vld [vmem:[#allocation5 + $0xb0] sm:$0xff]
        %v1117 = vld [vmem:[#allocation5 + $0xb8] sm:$0xff]
        %v1118 = vld [vmem:[#allocation5 + $0xc0] sm:$0xff]
        %v1119 = vld [vmem:[#allocation5 + $0xc8] sm:$0xff]
        %v1120 = vld [vmem:[#allocation5 + $0xd0] sm:$0xff]
        %v1121 = vld [vmem:[#allocation5 + $0xd8] sm:$0xff]
        %v1122 = vld [vmem:[#allocation5 + $0xe0] sm:$0xff]
        %v1123 = vld [vmem:[#allocation5 + $0xe8] sm:$0xff]
        %v1124 = vld [vmem:[#allocation5 + $0xf0] sm:$0xff]
        %v1125 = vld [vmem:[#allocation5 + $0xf8] sm:$0xff]
        %v1126 = vld [vmem:[#allocation5 + $0x100] sm:$0xff]
        %v1127 = vld [vmem:[#allocation5 + $0x108] sm:$0xff]
        %v1128 = vld [vmem:[#allocation5 + $0x110] sm:$0xff]
        %v1129 = vld [vmem:[#allocation5 + $0x118] sm:$0xff]
        %v1130 = vld [vmem:[#allocation5 + $0x120] sm:$0xff]
        %v1131 = vld [vmem:[#allocation5 + $0x128] sm:$0xff]
        %v1132 = vld [vmem:[#allocation5 + $0x130] sm:$0xff]
        %v1133 = vld [vmem:[#allocation5 + $0x138] sm:$0xff]
        %v1134 = vld [vmem:[#allocation5 + $0x140] sm:$0xff]
        %v1135 = vld [vmem:[#allocation5 + $0x148] sm:$0xff]
        %v1136 = vld [vmem:[#allocation5 + $0x150] sm:$0xff]
        %v1137 = vld [vmem:[#allocation5 + $0x158] sm:$0xff]
        %v1138 = vld [vmem:[#allocation5 + $0x160] sm:$0xff]
        %v1139 = vld [vmem:[#allocation5 + $0x168] sm:$0xff]
        %v1140 = vld [vmem:[#allocation5 + $0x170] sm:$0xff]
        %v1141 = vld [vmem:[#allocation5 + $0x178] sm:$0xff]
        %v1142 = vld [vmem:[#allocation5 + $0x180] sm:$0xff]
        %v1143 = vld [vmem:[#allocation5 + $0x188] sm:$0xff]
        %v1144 = vld [vmem:[#allocation5 + $0x190] sm:$0xff]
        %v1145 = vld [vmem:[#allocation5 + $0x198] sm:$0xff]
        %v1146 = vld [vmem:[#allocation5 + $0x1a0] sm:$0xff]
        %v1147 = vld [vmem:[#allocation5 + $0x1a8] sm:$0xff]
        %v1148 = vld [vmem:[#allocation5 + $0x1b0] sm:$0xff]
        %v1149 = vld [vmem:[#allocation5 + $0x1b8] sm:$0xff]
        %v1150 = vld [vmem:[#allocation5 + $0x1c0] sm:$0xff]
        %v1151 = vld [vmem:[#allocation5 + $0x1c8] sm:$0xff]
        %v1152 = vld [vmem:[#allocation5 + $0x1d0] sm:$0xff]
        %v1153 = vld [vmem:[#allocation5 + $0x1d8] sm:$0xff]
        %v1154 = vld [vmem:[#allocation5 + $0x1e0] sm:$0xff]
        %v1155 = vld [vmem:[#allocation5 + $0x1e8] sm:$0xff]
        %v1156 = vld [vmem:[#allocation5 + $0x1f0] sm:$0xff]
        %v1157 = vld [vmem:[#allocation5 + $0x1f8] sm:$0xff]
        %v1158 = vld [vmem:[#allocation5 + $0x200] sm:$0xff]
        %v1159 = vld [vmem:[#allocation5 + $0x208] sm:$0xff]
        %v1160 = vld [vmem:[#allocation5 + $0x210] sm:$0xff]
        %v1161 = vld [vmem:[#allocation5 + $0x218] sm:$0xff]
        %v1162 = vld [vmem:[#allocation5 + $0x220] sm:$0xff]
        %v1163 = vld [vmem:[#allocation5 + $0x228] sm:$0xff]
        %v1164 = vld [vmem:[#allocation5 + $0x230] sm:$0xff]
        %v1165 = vld [vmem:[#allocation5 + $0x238] sm:$0xff]
        %v1166 = vld [vmem:[#allocation5 + $0x240] sm:$0xff]
        %v1167 = vld [vmem:[#allocation5 + $0x248] sm:$0xff]
        %v1168 = vld [vmem:[#allocation5 + $0x250] sm:$0xff]
        %v1169 = vld [vmem:[#allocation5 + $0x258] sm:$0xff]
        %v1170 = vld [vmem:[#allocation5 + $0x260] sm:$0xff]
        %v1171 = vld [vmem:[#allocation5 + $0x268] sm:$0xff]
        %v1172 = vld [vmem:[#allocation5 + $0x270] sm:$0xff]
        %v1173 = vld [vmem:[#allocation5 + $0x278] sm:$0xff]
        %v1174 = vld [vmem:[#allocation5 + $0x280] sm:$0xff]
        %v1175 = vld [vmem:[#allocation5 + $0x288] sm:$0xff]
        %v1176 = vld [vmem:[#allocation5 + $0x290] sm:$0xff]
        %v1177 = vld [vmem:[#allocation5 + $0x298] sm:$0xff]
        %v1178 = vld [vmem:[#allocation5 + $0x2a0] sm:$0xff]
        %v1179 = vld [vmem:[#allocation5 + $0x2a8] sm:$0xff]
        %v1180 = vld [vmem:[#allocation5 + $0x2b0] sm:$0xff]
        %v1181 = vld [vmem:[#allocation5 + $0x2b8] sm:$0xff]
        %v1182 = vld [vmem:[#allocation5 + $0x2c0] sm:$0xff]
        %v1183 = vld [vmem:[#allocation5 + $0x2c8] sm:$0xff]
        %v1184 = vld [vmem:[#allocation5 + $0x2d0] sm:$0xff]
        %v1185 = vld [vmem:[#allocation5 + $0x2d8] sm:$0xff]
        %v1186 = vld [vmem:[#allocation5 + $0x2e0] sm:$0xff]
        %v1187 = vld [vmem:[#allocation5 + $0x2e8] sm:$0xff]
        %v1188 = vld [vmem:[#allocation5 + $0x2f0] sm:$0xff]
        %v1189 = vld [vmem:[#allocation5 + $0x2f8] sm:$0xff]
        %v1286 = vunpack.c.l.b16 %v1094
        %v1287 = vunpack.c.h.b16 %v1094
        %v1288 = vunpack.c.l.b16 %v1095
        %v1289 = vunpack.c.h.b16 %v1095
        %v1290 = vunpack.c.l.b16 %v1096
        %v1291 = vunpack.c.h.b16 %v1096
        %v1292 = vunpack.c.l.b16 %v1097
        %v1293 = vunpack.c.h.b16 %v1097
        %v1294 = vunpack.c.l.b16 %v1098
        %v1295 = vunpack.c.h.b16 %v1098
        %v1296 = vunpack.c.l.b16 %v1099
        %v1297 = vunpack.c.h.b16 %v1099
        %v1298 = vunpack.c.l.b16 %v1100
        %v1299 = vunpack.c.h.b16 %v1100
        %v1300 = vunpack.c.l.b16 %v1101
        %v1301 = vunpack.c.h.b16 %v1101
        %v1302 = vunpack.c.l.b16 %v1102
        %v1303 = vunpack.c.h.b16 %v1102
        %v1304 = vunpack.c.l.b16 %v1103
        %v1305 = vunpack.c.h.b16 %v1103
        %v1306 = vunpack.c.l.b16 %v1104
        %v1307 = vunpack.c.h.b16 %v1104
        %v1308 = vunpack.c.l.b16 %v1105
        %v1309 = vunpack.c.h.b16 %v1105
        %v1310 = vunpack.c.l.b16 %v1106
        %v1311 = vunpack.c.h.b16 %v1106
        %v1312 = vunpack.c.l.b16 %v1107
        %v1313 = vunpack.c.h.b16 %v1107
        %v1314 = vunpack.c.l.b16 %v1108
        %v1315 = vunpack.c.h.b16 %v1108
        %v1316 = vunpack.c.l.b16 %v1109
        %v1317 = vunpack.c.h.b16 %v1109
        %v1318 = vunpack.c.l.b16 %v1110
        %v1319 = vunpack.c.h.b16 %v1110
        %v1320 = vunpack.c.l.b16 %v1111
        %v1321 = vunpack.c.h.b16 %v1111
        %v1322 = vunpack.c.l.b16 %v1112
        %v1323 = vunpack.c.h.b16 %v1112
        %v1324 = vunpack.c.l.b16 %v1113
        %v1325 = vunpack.c.h.b16 %v1113
        %v1326 = vunpack.c.l.b16 %v1114
        %v1327 = vunpack.c.h.b16 %v1114
        %v1328 = vunpack.c.l.b16 %v1115
        %v1329 = vunpack.c.h.b16 %v1115
        %v1330 = vunpack.c.l.b16 %v1116
        %v1331 = vunpack.c.h.b16 %v1116
        %v1332 = vunpack.c.l.b16 %v1117
        %v1333 = vunpack.c.h.b16 %v1117
        %v1334 = vunpack.c.l.b16 %v1118
        %v1335 = vunpack.c.h.b16 %v1118
        %v1336 = vunpack.c.l.b16 %v1119
        %v1337 = vunpack.c.h.b16 %v1119
        %v1338 = vunpack.c.l.b16 %v1120
        %v1339 = vunpack.c.h.b16 %v1120
        %v1340 = vunpack.c.l.b16 %v1121
        %v1341 = vunpack.c.h.b16 %v1121
        %v1342 = vunpack.c.l.b16 %v1122
        %v1343 = vunpack.c.h.b16 %v1122
        %v1344 = vunpack.c.l.b16 %v1123
        %v1345 = vunpack.c.h.b16 %v1123
        %v1346 = vunpack.c.l.b16 %v1124
        %v1347 = vunpack.c.h.b16 %v1124
        %v1348 = vunpack.c.l.b16 %v1125
        %v1349 = vunpack.c.h.b16 %v1125
        %v1350 = vunpack.c.l.b16 %v1126
        %v1351 = vunpack.c.h.b16 %v1126
        %v1352 = vunpack.c.l.b16 %v1127
        %v1353 = vunpack.c.h.b16 %v1127
        %v1354 = vunpack.c.l.b16 %v1128
        %v1355 = vunpack.c.h.b16 %v1128
        %v1356 = vunpack.c.l.b16 %v1129
        %v1357 = vunpack.c.h.b16 %v1129
        %v1358 = vunpack.c.l.b16 %v1130
        %v1359 = vunpack.c.h.b16 %v1130
        %v1360 = vunpack.c.l.b16 %v1131
        %v1361 = vunpack.c.h.b16 %v1131
        %v1362 = vunpack.c.l.b16 %v1132
        %v1363 = vunpack.c.h.b16 %v1132
        %v1364 = vunpack.c.l.b16 %v1133
        %v1365 = vunpack.c.h.b16 %v1133
        %v1366 = vunpack.c.l.b16 %v1134
        %v1367 = vunpack.c.h.b16 %v1134
        %v1368 = vunpack.c.l.b16 %v1135
        %v1369 = vunpack.c.h.b16 %v1135
        %v1370 = vunpack.c.l.b16 %v1136
        %v1371 = vunpack.c.h.b16 %v1136
        %v1372 = vunpack.c.l.b16 %v1137
        %v1373 = vunpack.c.h.b16 %v1137
        %v1374 = vunpack.c.l.b16 %v1138
        %v1375 = vunpack.c.h.b16 %v1138
        %v1376 = vunpack.c.l.b16 %v1139
        %v1377 = vunpack.c.h.b16 %v1139
        %v1378 = vunpack.c.l.b16 %v1140
        %v1379 = vunpack.c.h.b16 %v1140
        %v1380 = vunpack.c.l.b16 %v1141
        %v1381 = vunpack.c.h.b16 %v1141
        %v1382 = vunpack.c.l.b16 %v1142
        %v1383 = vunpack.c.h.b16 %v1142
        %v1384 = vunpack.c.l.b16 %v1143
        %v1385 = vunpack.c.h.b16 %v1143
        %v1386 = vunpack.c.l.b16 %v1144
        %v1387 = vunpack.c.h.b16 %v1144
        %v1388 = vunpack.c.l.b16 %v1145
        %v1389 = vunpack.c.h.b16 %v1145
        %v1390 = vunpack.c.l.b16 %v1146
        %v1391 = vunpack.c.h.b16 %v1146
        %v1392 = vunpack.c.l.b16 %v1147
        %v1393 = vunpack.c.h.b16 %v1147
        %v1394 = vunpack.c.l.b16 %v1148
        %v1395 = vunpack.c.h.b16 %v1148
        %v1396 = vunpack.c.l.b16 %v1149
        %v1397 = vunpack.c.h.b16 %v1149
        %v1398 = vunpack.c.l.b16 %v1150
        %v1399 = vunpack.c.h.b16 %v1150
        %v1400 = vunpack.c.l.b16 %v1151
        %v1401 = vunpack.c.h.b16 %v1151
        %v1402 = vunpack.c.l.b16 %v1152
        %v1403 = vunpack.c.h.b16 %v1152
        %v1404 = vunpack.c.l.b16 %v1153
        %v1405 = vunpack.c.h.b16 %v1153
        %v1406 = vunpack.c.l.b16 %v1154
        %v1407 = vunpack.c.h.b16 %v1154
        %v1408 = vunpack.c.l.b16 %v1155
        %v1409 = vunpack.c.h.b16 %v1155
        %v1410 = vunpack.c.l.b16 %v1156
        %v1411 = vunpack.c.h.b16 %v1156
        %v1412 = vunpack.c.l.b16 %v1157
        %v1413 = vunpack.c.h.b16 %v1157
        %v1414 = vunpack.c.l.b16 %v1158
        %v1415 = vunpack.c.h.b16 %v1158
        %v1416 = vunpack.c.l.b16 %v1159
        %v1417 = vunpack.c.h.b16 %v1159
        %v1418 = vunpack.c.l.b16 %v1160
        %v1419 = vunpack.c.h.b16 %v1160
        %v1420 = vunpack.c.l.b16 %v1161
        %v1421 = vunpack.c.h.b16 %v1161
        %v1422 = vunpack.c.l.b16 %v1162
        %v1423 = vunpack.c.h.b16 %v1162
        %v1424 = vunpack.c.l.b16 %v1163
        %v1425 = vunpack.c.h.b16 %v1163
        %v1426 = vunpack.c.l.b16 %v1164
        %v1427 = vunpack.c.h.b16 %v1164
        %v1428 = vunpack.c.l.b16 %v1165
        %v1429 = vunpack.c.h.b16 %v1165
        %v1430 = vunpack.c.l.b16 %v1166
        %v1431 = vunpack.c.h.b16 %v1166
        %v1432 = vunpack.c.l.b16 %v1167
        %v1433 = vunpack.c.h.b16 %v1167
        %v1434 = vunpack.c.l.b16 %v1168
        %v1435 = vunpack.c.h.b16 %v1168
        %v1436 = vunpack.c.l.b16 %v1169
        %v1437 = vunpack.c.h.b16 %v1169
        %v1438 = vunpack.c.l.b16 %v1170
        %v1439 = vunpack.c.h.b16 %v1170
        %v1440 = vunpack.c.l.b16 %v1171
        %v1441 = vunpack.c.h.b16 %v1171
        %v1442 = vunpack.c.l.b16 %v1172
        %v1443 = vunpack.c.h.b16 %v1172
        %v1444 = vunpack.c.l.b16 %v1173
        %v1445 = vunpack.c.h.b16 %v1173
        %v1446 = vunpack.c.l.b16 %v1174
        %v1447 = vunpack.c.h.b16 %v1174
        %v1448 = vunpack.c.l.b16 %v1175
        %v1449 = vunpack.c.h.b16 %v1175
        %v1450 = vunpack.c.l.b16 %v1176
        %v1451 = vunpack.c.h.b16 %v1176
        %v1452 = vunpack.c.l.b16 %v1177
        %v1453 = vunpack.c.h.b16 %v1177
        %v1454 = vunpack.c.l.b16 %v1178
        %v1455 = vunpack.c.h.b16 %v1178
        %v1456 = vunpack.c.l.b16 %v1179
        %v1457 = vunpack.c.h.b16 %v1179
        %v1458 = vunpack.c.l.b16 %v1180
        %v1459 = vunpack.c.h.b16 %v1180
        %v1460 = vunpack.c.l.b16 %v1181
        %v1461 = vunpack.c.h.b16 %v1181
        %v1462 = vunpack.c.l.b16 %v1182
        %v1463 = vunpack.c.h.b16 %v1182
        %v1464 = vunpack.c.l.b16 %v1183
        %v1465 = vunpack.c.h.b16 %v1183
        %v1466 = vunpack.c.l.b16 %v1184
        %v1467 = vunpack.c.h.b16 %v1184
        %v1468 = vunpack.c.l.b16 %v1185
        %v1469 = vunpack.c.h.b16 %v1185
        %v1470 = vunpack.c.l.b16 %v1186
        %v1471 = vunpack.c.h.b16 %v1186
        %v1472 = vunpack.c.l.b16 %v1187
        %v1473 = vunpack.c.h.b16 %v1187
        %v1474 = vunpack.c.l.b16 %v1188
        %v1475 = vunpack.c.h.b16 %v1188
        %v1476 = vunpack.c.l.b16 %v1189
        %v1477 = vunpack.c.h.b16 %v1189
        %v1478 = vpack.c.b16 %v1292, %v1286
        %v1479 = vpack.c.b16 %v1293, %v1287
        %v1480 = vpack.c.b16 %v1294, %v1288
        %v1481 = vpack.c.b16 %v1295, %v1289
        %v1482 = vpack.c.b16 %v1296, %v1290
        %v1483 = vpack.c.b16 %v1297, %v1291
        %v1484 = vpack.c.b16 %v1304, %v1298
        %v1485 = vpack.c.b16 %v1305, %v1299
        %v1486 = vpack.c.b16 %v1306, %v1300
        %v1487 = vpack.c.b16 %v1307, %v1301
        %v1488 = vpack.c.b16 %v1308, %v1302
        %v1489 = vpack.c.b16 %v1309, %v1303
        %v1490 = vpack.c.b16 %v1316, %v1310
        %v1491 = vpack.c.b16 %v1317, %v1311
        %v1492 = vpack.c.b16 %v1318, %v1312
        %v1493 = vpack.c.b16 %v1319, %v1313
        %v1494 = vpack.c.b16 %v1320, %v1314
        %v1495 = vpack.c.b16 %v1321, %v1315
        %v1496 = vpack.c.b16 %v1328, %v1322
        %v1497 = vpack.c.b16 %v1329, %v1323
        %v1498 = vpack.c.b16 %v1330, %v1324
        %v1499 = vpack.c.b16 %v1331, %v1325
        %v1500 = vpack.c.b16 %v1332, %v1326
        %v1501 = vpack.c.b16 %v1333, %v1327
        %v1502 = vpack.c.b16 %v1340, %v1334
        %v1503 = vpack.c.b16 %v1341, %v1335
        %v1504 = vpack.c.b16 %v1342, %v1336
        %v1505 = vpack.c.b16 %v1343, %v1337
        %v1506 = vpack.c.b16 %v1344, %v1338
        %v1507 = vpack.c.b16 %v1345, %v1339
        %v1508 = vpack.c.b16 %v1352, %v1346
        %v1509 = vpack.c.b16 %v1353, %v1347
        %v1510 = vpack.c.b16 %v1354, %v1348
        %v1511 = vpack.c.b16 %v1355, %v1349
        %v1512 = vpack.c.b16 %v1356, %v1350
        %v1513 = vpack.c.b16 %v1357, %v1351
        %v1514 = vpack.c.b16 %v1364, %v1358
        %v1515 = vpack.c.b16 %v1365, %v1359
        %v1516 = vpack.c.b16 %v1366, %v1360
        %v1517 = vpack.c.b16 %v1367, %v1361
        %v1518 = vpack.c.b16 %v1368, %v1362
        %v1519 = vpack.c.b16 %v1369, %v1363
        %v1520 = vpack.c.b16 %v1376, %v1370
        %v1521 = vpack.c.b16 %v1377, %v1371
        %v1522 = vpack.c.b16 %v1378, %v1372
        %v1523 = vpack.c.b16 %v1379, %v1373
        %v1524 = vpack.c.b16 %v1380, %v1374
        %v1525 = vpack.c.b16 %v1381, %v1375
        %v1526 = vpack.c.b16 %v1388, %v1382
        %v1527 = vpack.c.b16 %v1389, %v1383
        %v1528 = vpack.c.b16 %v1390, %v1384
        %v1529 = vpack.c.b16 %v1391, %v1385
        %v1530 = vpack.c.b16 %v1392, %v1386
        %v1531 = vpack.c.b16 %v1393, %v1387
        %v1532 = vpack.c.b16 %v1400, %v1394
        %v1533 = vpack.c.b16 %v1401, %v1395
        %v1534 = vpack.c.b16 %v1402, %v1396
        %v1535 = vpack.c.b16 %v1403, %v1397
        %v1536 = vpack.c.b16 %v1404, %v1398
        %v1537 = vpack.c.b16 %v1405, %v1399
        %v1538 = vpack.c.b16 %v1412, %v1406
        %v1539 = vpack.c.b16 %v1413, %v1407
        %v1540 = vpack.c.b16 %v1414, %v1408
        %v1541 = vpack.c.b16 %v1415, %v1409
        %v1542 = vpack.c.b16 %v1416, %v1410
        %v1543 = vpack.c.b16 %v1417, %v1411
        %v1544 = vpack.c.b16 %v1424, %v1418
        %v1545 = vpack.c.b16 %v1425, %v1419
        %v1546 = vpack.c.b16 %v1426, %v1420
        %v1547 = vpack.c.b16 %v1427, %v1421
        %v1548 = vpack.c.b16 %v1428, %v1422
        %v1549 = vpack.c.b16 %v1429, %v1423
        %v1550 = vpack.c.b16 %v1436, %v1430
        %v1551 = vpack.c.b16 %v1437, %v1431
        %v1552 = vpack.c.b16 %v1438, %v1432
        %v1553 = vpack.c.b16 %v1439, %v1433
        %v1554 = vpack.c.b16 %v1440, %v1434
        %v1555 = vpack.c.b16 %v1441, %v1435
        %v1556 = vpack.c.b16 %v1448, %v1442
        %v1557 = vpack.c.b16 %v1449, %v1443
        %v1558 = vpack.c.b16 %v1450, %v1444
        %v1559 = vpack.c.b16 %v1451, %v1445
        %v1560 = vpack.c.b16 %v1452, %v1446
        %v1561 = vpack.c.b16 %v1453, %v1447
        %v1562 = vpack.c.b16 %v1460, %v1454
        %v1563 = vpack.c.b16 %v1461, %v1455
        %v1564 = vpack.c.b16 %v1462, %v1456
        %v1565 = vpack.c.b16 %v1463, %v1457
        %v1566 = vpack.c.b16 %v1464, %v1458
        %v1567 = vpack.c.b16 %v1465, %v1459
        %v1568 = vpack.c.b16 %v1472, %v1466
        %v1569 = vpack.c.b16 %v1473, %v1467
        %v1570 = vpack.c.b16 %v1474, %v1468
        %v1571 = vpack.c.b16 %v1475, %v1469
        %v1572 = vpack.c.b16 %v1476, %v1470
        %v1573 = vpack.c.b16 %v1477, %v1471
        %1670 = vmatprep.subr.bf16.mxu0 %v1479
        %1671 = vmatpush1.bf16.msra.mxu0 %v1478
        %1672 = vmatprep.subr.bf16.mxu0 %v1485
        %1673 = vmatpush1.bf16.msra.mxu0 %v1484
        %1674 = vmatprep.subr.bf16.mxu0 %v1491
        %1675 = vmatpush1.bf16.msra.mxu0 %v1490
        %1676 = vmatprep.subr.bf16.mxu0 %v1497
        %1677 = vmatpush1.bf16.msra.mxu0 %v1496
        %1678 = vmatprep.subr.bf16.mxu0 %v1503
        %1679 = vmatpush1.bf16.msra.mxu0 %v1502
        %1680 = vmatprep.subr.bf16.mxu0 %v1509
        %1681 = vmatpush1.bf16.msra.mxu0 %v1508
        %1682 = vmatprep.subr.bf16.mxu0 %v1515
        %1683 = vmatpush1.bf16.msra.mxu0 %v1514
        %1684 = vmatprep.subr.bf16.mxu0 %v1521
        %1685 = vmatpush1.bf16.msra.mxu0 %v1520
        %1686 = vmatprep.subr.bf16.mxu0 %v1527
        %1687 = vmatpush1.bf16.msra.mxu0 %v1526
        %1688 = vmatprep.subr.bf16.mxu0 %v1533
        %1689 = vmatpush1.bf16.msra.mxu0 %v1532
        %1690 = vmatprep.subr.bf16.mxu0 %v1539
        %1691 = vmatpush1.bf16.msra.mxu0 %v1538
        %1692 = vmatprep.subr.bf16.mxu0 %v1545
        %1693 = vmatpush1.bf16.msra.mxu0 %v1544
        %1694 = vmatprep.subr.bf16.mxu0 %v1551
        %1695 = vmatpush1.bf16.msra.mxu0 %v1550
        %1696 = vmatprep.subr.bf16.mxu0 %v1557
        %1697 = vmatpush1.bf16.msra.mxu0 %v1556
        %1698 = vmatprep.subr.bf16.mxu0 %v1563
        %1699 = vmatpush1.bf16.msra.mxu0 %v1562
        %1700 = vmatprep.subr.bf16.mxu0 %v1569
        %1701 = vmatpush1.bf16.msra.mxu0 %v1568
        %1702 = vmatprep.mubr.bf16.mxu0 %v1093
        %1703 = vmatmul.mubr.bf16.gmra.mrb[0].mxu0 %v1092
        %v1704 = vpop.f32.mrb[0].mxu0
        %v1705 = vadd.f32 0.0, %v1704
        %v1706 = vpop.f32.mrb[0].mxu0
        %v1707 = vadd.f32 0.0, %v1706
        %v1708 = vpop.f32.mrb[0].mxu0
        %v1709 = vadd.f32 0.0, %v1708
        %v1710 = vpop.f32.mrb[0].mxu0
        %v1711 = vadd.f32 0.0, %v1710
        %1712 = vdwg.mxu0
        %1713 = vmatprep.subr.bf16.mxu0 %v1481
        %1714 = vmatpush1.bf16.msra.mxu0 %v1480
        %1715 = vmatprep.subr.bf16.mxu0 %v1487
        %1716 = vmatpush1.bf16.msra.mxu0 %v1486
        %1717 = vmatprep.subr.bf16.mxu0 %v1493
        %1718 = vmatpush1.bf16.msra.mxu0 %v1492
        %1719 = vmatprep.subr.bf16.mxu0 %v1499
        %1720 = vmatpush1.bf16.msra.mxu0 %v1498
        %1721 = vmatprep.subr.bf16.mxu0 %v1505
        %1722 = vmatpush1.bf16.msra.mxu0 %v1504
        %1723 = vmatprep.subr.bf16.mxu0 %v1511
        %1724 = vmatpush1.bf16.msra.mxu0 %v1510
        %1725 = vmatprep.subr.bf16.mxu0 %v1517
        %1726 = vmatpush1.bf16.msra.mxu0 %v1516
        %1727 = vmatprep.subr.bf16.mxu0 %v1523
        %1728 = vmatpush1.bf16.msra.mxu0 %v1522
        %1729 = vmatprep.subr.bf16.mxu0 %v1529
        %1730 = vmatpush1.bf16.msra.mxu0 %v1528
        %1731 = vmatprep.subr.bf16.mxu0 %v1535
        %1732 = vmatpush1.bf16.msra.mxu0 %v1534
        %1733 = vmatprep.subr.bf16.mxu0 %v1541
        %1734 = vmatpush1.bf16.msra.mxu0 %v1540
        %1735 = vmatprep.subr.bf16.mxu0 %v1547
        %1736 = vmatpush1.bf16.msra.mxu0 %v1546
        %1737 = vmatprep.subr.bf16.mxu0 %v1553
        %1738 = vmatpush1.bf16.msra.mxu0 %v1552
        %1739 = vmatprep.subr.bf16.mxu0 %v1559
        %1740 = vmatpush1.bf16.msra.mxu0 %v1558
        %1741 = vmatprep.subr.bf16.mxu0 %v1565
        %1742 = vmatpush1.bf16.msra.mxu0 %v1564
        %1743 = vmatprep.subr.bf16.mxu0 %v1571
        %1744 = vmatpush1.bf16.msra.mxu0 %v1570
        %1745 = vmatprep.mubr.bf16.mxu0 %v1093
        %1746 = vmatmul.mubr.bf16.gmra.mrb[0].mxu0 %v1092
        %v1747 = vpop.f32.mrb[0].mxu0
        %v1748 = vadd.f32 0.0, %v1747
        %v1749 = vpop.f32.mrb[0].mxu0
        %v1750 = vadd.f32 0.0, %v1749
        %v1751 = vpop.f32.mrb[0].mxu0
        %v1752 = vadd.f32 0.0, %v1751
        %v1753 = vpop.f32.mrb[0].mxu0
        %v1754 = vadd.f32 0.0, %v1753
        %1755 = vdwg.mxu0
        %1756 = vmatprep.subr.bf16.mxu0 %v1483
        %1757 = vmatpush1.bf16.msra.mxu0 %v1482
        %1758 = vmatprep.subr.bf16.mxu0 %v1489
        %1759 = vmatpush1.bf16.msra.mxu0 %v1488
        %1760 = vmatprep.subr.bf16.mxu0 %v1495
        %1761 = vmatpush1.bf16.msra.mxu0 %v1494
        %1762 = vmatprep.subr.bf16.mxu0 %v1501
        %1763 = vmatpush1.bf16.msra.mxu0 %v1500
        %1764 = vmatprep.subr.bf16.mxu0 %v1507
        %1765 = vmatpush1.bf16.msra.mxu0 %v1506
        %1766 = vmatprep.subr.bf16.mxu0 %v1513
        %1767 = vmatpush1.bf16.msra.mxu0 %v1512
        %1768 = vmatprep.subr.bf16.mxu0 %v1519
        %1769 = vmatpush1.bf16.msra.mxu0 %v1518
        %1770 = vmatprep.subr.bf16.mxu0 %v1525
        %1771 = vmatpush1.bf16.msra.mxu0 %v1524
        %1772 = vmatprep.subr.bf16.mxu0 %v1531
        %1773 = vmatpush1.bf16.msra.mxu0 %v1530
        %1774 = vmatprep.subr.bf16.mxu0 %v1537
        %1775 = vmatpush1.bf16.msra.mxu0 %v1536
        %1776 = vmatprep.subr.bf16.mxu0 %v1543
        %1777 = vmatpush1.bf16.msra.mxu0 %v1542
        %1778 = vmatprep.subr.bf16.mxu0 %v1549
        %1779 = vmatpush1.bf16.msra.mxu0 %v1548
        %1780 = vmatprep.subr.bf16.mxu0 %v1555
        %1781 = vmatpush1.bf16.msra.mxu0 %v1554
        %1782 = vmatprep.subr.bf16.mxu0 %v1561
        %1783 = vmatpush1.bf16.msra.mxu0 %v1560
        %1784 = vmatprep.subr.bf16.mxu0 %v1567
        %1785 = vmatpush1.bf16.msra.mxu0 %v1566
        %1786 = vmatprep.subr.bf16.mxu0 %v1573
        %1787 = vmatpush1.bf16.msra.mxu0 %v1572
        %1788 = vmatprep.mubr.bf16.mxu0 %v1093
        %1789 = vmatmul.mubr.bf16.gmra.mrb[0].mxu0 %v1092
        %v1790 = vpop.f32.mrb[0].mxu0
        %v1791 = vadd.f32 0.0, %v1790
        %v1792 = vpop.f32.mrb[0].mxu0
        %v1793 = vadd.f32 0.0, %v1792
        %v1794 = vpop.f32.mrb[0].mxu0
        %v1795 = vadd.f32 0.0, %v1794
        %v1796 = vpop.f32.mrb[0].mxu0
        %v1797 = vadd.f32 0.0, %v1796
        %1798 = vdwg.mxu0
        %v1799 = vrot.slane %v1705, 7
        %v1800 = vrot.slane %v1707, 7
        %v1801 = vrot.slane %v1709, 7
        %v1802 = vrot.slane %v1711, 7
        %v1803 = vsel %vm1025, %v1799, %v1801
        %v1804 = vsel %vm1025, %v1800, %v1802
        %v1805 = vsel %vm1025, %v1801, %v1799
        %v1806 = vsel %vm1025, %v1802, %v1800
        %v1807 = vsel %vm1032, 0.0, %v1805
        %v1808 = vsel %vm1032, 0.0, %v1806
        %v1809 = vsel %vm1033, 0.0, %v1803
        %v1810 = vsel %vm1033, 0.0, %v1804
        %v1811 = vrot.slane %v1791, 1
        %v1812 = vrot.slane %v1793, 1
        %v1813 = vrot.slane %v1795, 1
        %v1814 = vrot.slane %v1797, 1
        %v1815 = vsel %vm1044, %v1811, %v1813
        %v1816 = vsel %vm1044, %v1812, %v1814
        %v1817 = vsel %vm1044, %v1813, %v1811
        %v1818 = vsel %vm1044, %v1814, %v1812
        %v1819 = vsel %vm1051, 0.0, %v1815
        %v1820 = vsel %vm1051, 0.0, %v1816
        %v1821 = vsel %vm1052, 0.0, %v1817
        %v1822 = vsel %vm1052, 0.0, %v1818
        %v1823 = vadd.f32 %v1748, %v1807
        %v1824 = vadd.f32 %v1750, %v1808
        %v1825 = vadd.f32 %v1752, %v1809
        %v1826 = vadd.f32 %v1754, %v1810
        %v1827 = vadd.f32 %v1823, %v1819
        %v1828 = vadd.f32 %v1824, %v1820
        %v1829 = vadd.f32 %v1825, %v1821
        %v1830 = vadd.f32 %v1826, %v1822
        %v1831 = vlaneseq
        %v1832 = vshrl.u32 %v1831, 7
        %v1833 = vsub.s32 1, %v1832
        %v1834 = vrot.slane %v313, %v1833
        %v1835 = vlaneseq
        %v1836 = vshrl.u32 %v1835, 7
        %v1837 = vsub.s32 5, %v1836
        %v1838 = vrot.slane %v313, %v1837
        %v1841 = vlaneseq
        %v1842 = vshrl.u32 %v1841, 7
        %v1843 = vsub.s32 1, %v1842
        %v1844 = vrot.slane %v1834, %v1843
        %v1845 = vlaneseq
        %v1846 = vshrl.u32 %v1845, 7
        %v1847 = vsub.s32 1, %v1846
        %v1848 = vrot.slane %v1838, %v1847
        %v1849 = vadd.f32 %v1827, %v1844
        %v1850 = vadd.f32 %v1828, %v1848
        %v1851 = vadd.f32 %v1829, %v1844
        %v1852 = vadd.f32 %v1830, %v1848
        %v1853 = vadd.f32 %v1849, %v1851
        %v1854 = vrot.slane %v1853, 4
        %v1855 = vadd.f32 %v1853, %v1854
        %v1856 = vrot.slane %v1855, 2
        %v1857 = vadd.f32 %v1855, %v1856
        %v1858 = vrot.slane %v1857, 1
        %v1859 = vadd.f32 %v1857, %v1858
        %v1860 = vadd.f32 %v1850, %v1852
        %v1861 = vrot.slane %v1860, 4
        %v1862 = vadd.f32 %v1860, %v1861
        %v1863 = vrot.slane %v1862, 2
        %v1864 = vadd.f32 %v1862, %v1863
        %v1865 = vrot.slane %v1864, 1
        %v1866 = vadd.f32 %v1864, %v1865
        %v1867 = vld [vmem:[%s4] sm:$0xff]
        %v1868 = vld [vmem:[%s4 + $0x8] sm:$0xff]
        %v1869 = vld [vmem:[%s4 + $0x10] sm:$0xff]
        %v1870 = vld [vmem:[%s4 + $0x18] sm:$0xff]
        %v1871 = vld [vmem:[%s4 + $0x20] sm:$0xff]
        %v1872 = vld [vmem:[%s4 + $0x28] sm:$0xff]
        %v1873 = vld [vmem:[%s4 + $0x30] sm:$0xff]
        %v1874 = vld [vmem:[%s4 + $0x38] sm:$0xff]
        %v1875 = vld [vmem:[%s4 + $0x40] sm:$0xff]
        %v1876 = vld [vmem:[%s4 + $0x48] sm:$0xff]
        %v1877 = vld [vmem:[%s4 + $0x50] sm:$0xff]
        %v1878 = vld [vmem:[%s4 + $0x58] sm:$0xff]
        %v1879 = vld [vmem:[%s4 + $0x60] sm:$0xff]
        %v1880 = vld [vmem:[%s4 + $0x68] sm:$0xff]
        %v1881 = vld [vmem:[%s4 + $0x70] sm:$0xff]
        %v1882 = vld [vmem:[%s4 + $0x78] sm:$0xff]
        %v1883 = vld [vmem:[%s4 + $0x80] sm:$0xff]
        %v1884 = vld [vmem:[%s4 + $0x88] sm:$0xff]
        %v1885 = vld [vmem:[%s4 + $0x90] sm:$0xff]
        %v1886 = vld [vmem:[%s4 + $0x98] sm:$0xff]
        %v1887 = vld [vmem:[%s4 + $0xa0] sm:$0xff]
        %v1888 = vld [vmem:[%s4 + $0xa8] sm:$0xff]
        %v1889 = vld [vmem:[%s4 + $0xb0] sm:$0xff]
        %v1890 = vld [vmem:[%s4 + $0xb8] sm:$0xff]
        %v1891 = vld [vmem:[%s4 + $0xc0] sm:$0xff]
        %v1892 = vld [vmem:[%s4 + $0xc8] sm:$0xff]
        %v1893 = vld [vmem:[%s4 + $0xd0] sm:$0xff]
        %v1894 = vld [vmem:[%s4 + $0xd8] sm:$0xff]
        %v1895 = vld [vmem:[%s4 + $0xe0] sm:$0xff]
        %v1896 = vld [vmem:[%s4 + $0xe8] sm:$0xff]
        %v1897 = vld [vmem:[%s4 + $0xf0] sm:$0xff]
        %v1898 = vld [vmem:[%s4 + $0xf8] sm:$0xff]
        %v1899 = vlaneseq
        %v1900 = vshrl.u32 %v1899, 7
        %v1901 = vsub.s32 3, %v1900
        %v1902 = vrot.slane %v313, %v1901
        %1904 = vmatprep.subr.mxu0 0.0
        %1905 = vmatpush1.msra.mxu0 %v1867
        %1906 = vmatprep.subr.mxu0 0.0
        %1907 = vmatpush1.msra.mxu0 %v1868
        %1908 = vmatprep.subr.mxu0 0.0
        %1909 = vmatpush1.msra.mxu0 %v1869
        %1910 = vmatprep.subr.mxu0 0.0
        %1911 = vmatpush1.msra.mxu0 %v1870
        %1912 = vmatprep.subr.mxu0 0.0
        %1913 = vmatpush1.msra.mxu0 %v1871
        %1914 = vmatprep.subr.mxu0 0.0
        %1915 = vmatpush1.msra.mxu0 %v1872
        %1916 = vmatprep.subr.mxu0 0.0
        %1917 = vmatpush1.msra.mxu0 %v1873
        %1918 = vmatprep.subr.mxu0 0.0
        %1919 = vmatpush1.msra.mxu0 %v1874
        %1920 = vmatprep.subr.mxu0 0.0
        %1921 = vmatpush1.msra.mxu0 %v1875
        %1922 = vmatprep.subr.mxu0 0.0
        %1923 = vmatpush1.msra.mxu0 %v1876
        %1924 = vmatprep.subr.mxu0 0.0
        %1925 = vmatpush1.msra.mxu0 %v1877
        %1926 = vmatprep.subr.mxu0 0.0
        %1927 = vmatpush1.msra.mxu0 %v1878
        %1928 = vmatprep.subr.mxu0 0.0
        %1929 = vmatpush1.msra.mxu0 %v1879
        %1930 = vmatprep.subr.mxu0 0.0
        %1931 = vmatpush1.msra.mxu0 %v1880
        %1932 = vmatprep.subr.mxu0 0.0
        %1933 = vmatpush1.msra.mxu0 %v1881
        %1934 = vmatprep.subr.mxu0 0.0
        %1935 = vmatpush1.msra.mxu0 %v1882
        %1936 = vmatprep.subr.mxu0 0.0
        %1937 = vmatpush1.msra.mxu0 %v1883
        %1938 = vmatprep.subr.mxu0 0.0
        %1939 = vmatpush1.msra.mxu0 %v1884
        %1940 = vmatprep.subr.mxu0 0.0
        %1941 = vmatpush1.msra.mxu0 %v1885
        %1942 = vmatprep.subr.mxu0 0.0
        %1943 = vmatpush1.msra.mxu0 %v1886
        %1944 = vmatprep.subr.mxu0 0.0
        %1945 = vmatpush1.msra.mxu0 %v1887
        %1946 = vmatprep.subr.mxu0 0.0
        %1947 = vmatpush1.msra.mxu0 %v1888
        %1948 = vmatprep.subr.mxu0 0.0
        %1949 = vmatpush1.msra.mxu0 %v1889
        %1950 = vmatprep.subr.mxu0 0.0
        %1951 = vmatpush1.msra.mxu0 %v1890
        %1952 = vmatprep.subr.mxu0 0.0
        %1953 = vmatpush1.msra.mxu0 %v1891
        %1954 = vmatprep.subr.mxu0 0.0
        %1955 = vmatpush1.msra.mxu0 %v1892
        %1956 = vmatprep.subr.mxu0 0.0
        %1957 = vmatpush1.msra.mxu0 %v1893
        %1958 = vmatprep.subr.mxu0 0.0
        %1959 = vmatpush1.msra.mxu0 %v1894
        %1960 = vmatprep.subr.mxu0 0.0
        %1961 = vmatpush1.msra.mxu0 %v1895
        %1962 = vmatprep.subr.mxu0 0.0
        %1963 = vmatpush1.msra.mxu0 %v1896
        %1964 = vmatprep.subr.mxu0 0.0
        %1965 = vmatpush1.msra.mxu0 %v1897
        %1966 = vmatprep.subr.mxu0 0.0
        %1967 = vmatpush1.msra.mxu0 %v1898
        %1968 = vmatprep.mubr.f32.mxu0 %v1866
        %1969 = vmatmul.mubr.f32.gmra.mrb[0].mxu0 %v1859
        %v1970 = vpop.f32.mrb[0].mxu0
        %v1971 = vadd.f32 %v1902, %v1970
        %v1972 = vpop.f32.mrb[0].mxu0
        %1973 = vdwg.mxu0
        %v1974 = vmax.f32 %v1971, 0.0
        %v1975 = vld [vmem:[%s5] sm:$0xff]
        %v1977 = vcombine.high %v1975, %v1975
        %v1978 = vlaneseq
        %v1979 = vshrl.u32 %v1978, 7
        %v1980 = vsub.s32 2, %v1979
        %v1981 = vrot.slane %v313, %v1980
        %v1982 = vlaneseq
        %v1983 = vshrl.u32 %v1982, 7
        %v1984 = vsub.s32 6, %v1983
        %v1985 = vrot.slane %v313, %v1984
        %vm1988 = vcmask 31744
        %v1990 = vsel %vm1988, %v1974, 0
        %vm1992 = vcmask 1043456
        %v1993 = vsel %vm1992, %v1975, 0
        %v1995 = vsel %vm1992, %v1977, 0
        %1997 = vmatprep.subr.mxu0 %v1995
        %1998 = vmatpush1.msra.mxu0 %v1993
        %1999 = vmatprep.subr.mxu0 0.0
        %2000 = vmatpush1.msra.mxu0 0.0
        %2001 = vmatprep.subr.mxu0 0.0
        %2002 = vmatpush1.msra.mxu0 0.0
        %2003 = vmatprep.subr.mxu0 0.0
        %2004 = vmatpush1.msra.mxu0 0.0
        %2005 = vmatprep.subr.mxu0 0.0
        %2006 = vmatpush1.msra.mxu0 0.0
        %2007 = vmatprep.subr.mxu0 0.0
        %2008 = vmatpush1.msra.mxu0 0.0
        %2009 = vmatprep.subr.mxu0 0.0
        %2010 = vmatpush1.msra.mxu0 0.0
        %2011 = vmatprep.subr.mxu0 0.0
        %2012 = vmatpush1.msra.mxu0 0.0
        %2013 = vmatprep.subr.mxu0 0.0
        %2014 = vmatpush1.msra.mxu0 0.0
        %2015 = vmatprep.subr.mxu0 0.0
        %2016 = vmatpush1.msra.mxu0 0.0
        %2017 = vmatprep.subr.mxu0 0.0
        %2018 = vmatpush1.msra.mxu0 0.0
        %2019 = vmatprep.subr.mxu0 0.0
        %2020 = vmatpush1.msra.mxu0 0.0
        %2021 = vmatprep.subr.mxu0 0.0
        %2022 = vmatpush1.msra.mxu0 0.0
        %2023 = vmatprep.subr.mxu0 0.0
        %2024 = vmatpush1.msra.mxu0 0.0
        %2025 = vmatprep.subr.mxu0 0.0
        %2026 = vmatpush1.msra.mxu0 0.0
        %2027 = vmatprep.subr.mxu0 0.0
        %2028 = vmatpush1.msra.mxu0 0.0
        %2029 = vmatprep.subr.mxu0 0.0
        %2030 = vmatpush1.msra.mxu0 0.0
        %2031 = vmatprep.subr.mxu0 0.0
        %2032 = vmatpush1.msra.mxu0 0.0
        %2033 = vmatprep.subr.mxu0 0.0
        %2034 = vmatpush1.msra.mxu0 0.0
        %2035 = vmatprep.subr.mxu0 0.0
        %2036 = vmatpush1.msra.mxu0 0.0
        %2037 = vmatprep.subr.mxu0 0.0
        %2038 = vmatpush1.msra.mxu0 0.0
        %2039 = vmatprep.subr.mxu0 0.0
        %2040 = vmatpush1.msra.mxu0 0.0
        %2041 = vmatprep.subr.mxu0 0.0
        %2042 = vmatpush1.msra.mxu0 0.0
        %2043 = vmatprep.subr.mxu0 0.0
        %2044 = vmatpush1.msra.mxu0 0.0
        %2045 = vmatprep.subr.mxu0 0.0
        %2046 = vmatpush1.msra.mxu0 0.0
        %2047 = vmatprep.subr.mxu0 0.0
        %2048 = vmatpush1.msra.mxu0 0.0
        %2049 = vmatprep.subr.mxu0 0.0
        %2050 = vmatpush1.msra.mxu0 0.0
        %2051 = vmatprep.subr.mxu0 0.0
        %2052 = vmatpush1.msra.mxu0 0.0
        %2053 = vmatprep.subr.mxu0 0.0
        %2054 = vmatpush1.msra.mxu0 0.0
        %2055 = vmatprep.subr.mxu0 0.0
        %2056 = vmatpush1.msra.mxu0 0.0
        %2057 = vmatprep.subr.mxu0 0.0
        %2058 = vmatpush1.msra.mxu0 0.0
        %2059 = vmatprep.subr.mxu0 0.0
        %2060 = vmatpush1.msra.mxu0 0.0
        %2061 = vmatprep.mubr.f32.mxu0 0.0
        %2062 = vmatmul.mubr.f32.gmra.mrb[0].mxu0 %v1990
        %v2063 = vpop.f32.mrb[0].mxu0
        %v2064 = vadd.f32 %v1981, %v2063
        %v2065 = vpop.f32.mrb[0].mxu0
        %v2066 = vadd.f32 %v1985, %v2065
        %2067 = vdwg.mxu0
        %v2068 = vxor.u32 %v2064, 2147483648
        %v2069 = vxor.u32 %v2066, 2147483648
        %v2070 = vmul.f32 %v2068, 1.442695
        %v2071 = vpow.pop %v2070
        %v2072 = vmul.f32 %v2069, 1.442695
        %v2073 = vpow.pop %v2072
        %v2074 = vadd.f32 %v2071, 1.0
        %v2075 = vadd.f32 %v2073, 1.0
        %v2076 = vrcp.pop %v2074
        %v2077 = vmul.f32 1.0, %v2076
        %v2078 = vrcp.pop %v2075
        %v2079 = vmul.f32 1.0, %v2078
        %v2080 = vlaneseq
        %v2081 = vshrl.u32 %v2080, 7
        %v2082 = vsub.s32 0, %v2081
        %v2083 = vrot.slane %v2077, %v2082
        %v2084 = vlaneseq
        %v2085 = vshrl.u32 %v2084, 7
        %v2086 = vsub.s32 0, %v2085
        %v2087 = vrot.slane %v2079, %v2086
        %v2088 = vmul.f32 %v1849, %v2083
        %v2089 = vmul.f32 %v1850, %v2087
        %v2090 = vmul.f32 %v1851, %v2083
        %v2091 = vmul.f32 %v1852, %v2087
        %v2092 = vadd.f32 %v2088, %v280
        %v2093 = vadd.f32 %v2089, %v281
        %v2094 = vadd.f32 %v2090, %v282
        %v2095 = vadd.f32 %v2091, %v283
        %2096 = vst [vmem:[%s274] sm:$0xff] %v2092
        %2097 = vst [vmem:[%s274 + $0x8] sm:$0xff] %v2093
        %2098 = vst [vmem:[%s274 + $0x10] sm:$0xff] %v2094
        %2099 = vst [vmem:[%s274 + $0x18] sm:$0xff] %v2095
        %s2100 = sand.u32 %s161, 1
        %s2101 = scalar_lea.sflag [#allocation4], %s2100
        %s2102 = sand.u32 %s161, 1
        %s2103 = smul.addr %s2102, 32
        %s2104 = scalar_lea.vmem [#allocation7], %s2103
        // Predicated region
        $region53: #{tpu_custom_call.1} parent=43 // pred_check
          %p2105 = pneg %p171
        $region54: #{tpu_custom_call.1} parent=43 // pred_check_branch
          %2107 = sbr.rel (%p2105) target = $region56
        $region55: #{tpu_custom_call.1} parent=43 // pred_region
          %s2109 = ssub.s32 512, 512
          %2110 = vsyncadd %s2101, %s2109
          %s2111 = smul.addr %s22, 4
          %s2112 = smul.addr %s2111, 128
          %s2113 = scalar_lea.hbm %s6, %s2112
          %s2114 = sshll.u32 %s2104, 4
          %s2115 = int_to_ptr.vmem [resolvable:$true] %s2114
          %2120 = dma.vmem_to_hbm [thread:$0]  %s2115, 512, %s2113, %s2101, 256, 256, 16
        $region56: #{tpu_custom_call.1} parent=43 // pred_fallthru
          _
      $region44: #{tpu_custom_call.1} parent=5 // pred_fallthru
        _
      %p2121 = scmp.le.s32.totalorder 2, %s17
      // Predicated region
      $region57: #{tpu_custom_call.1} parent=5 // pred_check
        %p2122 = pneg %p2121
      $region58: #{tpu_custom_call.1} parent=5 // pred_check_branch
        %2124 = sbr.rel (%p2122) target = $region60
      $region59: #{tpu_custom_call.1} parent=5 // pred_region
        %s2125 = ssub.s32 %s17, 2
        // Predicated region
        $region61: #{tpu_custom_call.1} parent=59 // pred_check
          %p2126 = pneg %p177
        $region62: #{tpu_custom_call.1} parent=59 // pred_check_branch
          %2128 = sbr.rel (%p2126) target = $region64
        $region63: #{tpu_custom_call.1} parent=59 // pred_region
          %s2129 = sand.u32 %s162, 1
          %s2130 = scalar_lea.sflag [#allocation4], %s2129
          %s2131 = sand.u32 %s162, 1
          %s2132 = smul.addr %s2131, 32
          %s2133 = scalar_lea.vmem [#allocation7], %s2132
          %2134 = dma.done %s2130, 512
        $region64: #{tpu_custom_call.1} parent=59 // pred_fallthru
          _
      $region60: #{tpu_custom_call.1} parent=5 // pred_fallthru
        _
    $region6: #{tpu_custom_call.1} parent=1 // loop_footer
      %s21 = sadd.s32 1, %s17
    $region7: #{tpu_custom_call.1} parent=1 // loop_footer_branch
      %16 = sbr.rel target = $region3
    $region8: #{tpu_custom_call.1} parent=1 // loop_exit
      _
    %2135 = vsyncpa [#allocation3], 1
    %s2136 = scalar_lea.sflag [#allocation3], 1
    %2137 = vsyncpa %s2136, 1
    %2138 = vsyncpa [#allocation6], 1
    %2139 = vsyncpa [#allocation4], 1
    %s2140 = scalar_lea.sflag [#allocation4], 1
    %2141 = vsyncpa %s2140, 1

</llo_original>
